<compile_context>
chip_gen: v7x
topology: tpu7x:2x2x1
jax: 0.10.0
libtpu: 0.0.40
codegen_flags: <defaults>
</compile_context>

<pallas_src>
import functools

import jax
import jax.numpy as jnp
import numpy as np
from jax.experimental import pallas as pl
from jax.experimental.pallas import tpu as pltpu

NUM_EXPERTS = 4
TILE_I = 256                    # output-row tile of the propagation matmuls
TILE_K = 512                    # reduction tile over A columns / feature rows
TILE_P = 256                    # pair-row tile of the MoE head
VMEM_LIMIT = 32 * 1024 * 1024   # explicit scoped-VMEM budget (v7x-safe)


# ----------------------------------------------------------------------------
# GCN propagation kernel:  out[i_tile] = act( sum_k A[i,k] @ (X[k] @ W) + b )
# ----------------------------------------------------------------------------
def _gcn_conv_kernel(apply_relu, cnt_ref, idx_ref, a_ref, x_ref, w_ref, b_ref,
                     out_ref, acc_ref):
    del idx_ref  # only used by the index_maps
    i = pl.program_id(0)
    k = pl.program_id(1)

    @pl.when(k == 0)
    def _():
        acc_ref[...] = jnp.zeros_like(acc_ref)

    # Skip padded reduction slots (block-sparse adjacency).
    @pl.when(k < cnt_ref[i])
    def _():
        xw = jnp.dot(x_ref[...], w_ref[...],
                     preferred_element_type=jnp.float32).astype(jnp.bfloat16)
        acc_ref[...] += jnp.dot(a_ref[...], xw,
                                preferred_element_type=jnp.float32)

    @pl.when(k == pl.num_programs(1) - 1)
    def _():
        r = acc_ref[...] + b_ref[...]
        if apply_relu:
            r = jnp.maximum(r, 0.0)
        out_ref[...] = r.astype(out_ref.dtype)


def gcn_conv(a_bf16, x_bf16, w_bf16, bias_f32, blk_cnt, blk_idx,
             *, apply_relu, out_dtype):
    n_pad = a_bf16.shape[0]
    fin = x_bf16.shape[1]
    h = w_bf16.shape[1]
    num_i = n_pad // TILE_I
    max_k = blk_idx.shape[1]

    grid_spec = pltpu.PrefetchScalarGridSpec(
        num_scalar_prefetch=2,
        grid=(num_i, max_k),
        in_specs=[
            pl.BlockSpec((TILE_I, TILE_K), lambda i, k, cnt, idx: (i, idx[i, k])),
            pl.BlockSpec((TILE_K, fin),    lambda i, k, cnt, idx: (idx[i, k], 0)),
            pl.BlockSpec((fin, h),         lambda i, k, cnt, idx: (0, 0)),
            pl.BlockSpec((1, h),           lambda i, k, cnt, idx: (0, 0)),
        ],
        out_specs=pl.BlockSpec((TILE_I, h), lambda i, k, cnt, idx: (i, 0)),
        scratch_shapes=[pltpu.VMEM((TILE_I, h), jnp.float32)],
    )
    return pl.pallas_call(
        functools.partial(_gcn_conv_kernel, apply_relu),
        out_shape=jax.ShapeDtypeStruct((n_pad, h), out_dtype),
        grid_spec=grid_spec,
        compiler_params=pltpu.CompilerParams(
            dimension_semantics=("parallel", "arbitrary"),
            vmem_limit_bytes=VMEM_LIMIT),
    )(blk_cnt, blk_idx, a_bf16, x_bf16, w_bf16, bias_f32)


# ----------------------------------------------------------------------------
# Pair MoE head:  MoE(32->16) -> relu -> MoE(16->2) -> log_softmax
# ----------------------------------------------------------------------------
def _moe_combine(x, w_gate, w_pack, b_pack):
    """Eval-mode noisy top-k gating, k=1: clean logits, one-hot gates,
    experts packed into ONE [D, E*H] matmul."""
    n_e = w_gate.shape[1]
    out_dim = w_pack.shape[1] // n_e

    logits = jnp.dot(x, w_gate, preferred_element_type=jnp.float32)   # [T, E]
    e_iota = jax.lax.broadcasted_iota(jnp.int32, logits.shape, 1)
    row_max = jnp.max(logits, axis=1, keepdims=True)
    # first-occurrence argmax (matches torch.topk tie-break); softmax of the
    # single top-1 logit is exactly 1.0, so gates are one-hot.
    first = jnp.min(jnp.where(logits == row_max, e_iota, n_e),
                    axis=1, keepdims=True)
    gates = (e_iota == first).astype(jnp.float32)                     # [T, E]

    y = jnp.dot(x, w_pack, preferred_element_type=jnp.float32) + b_pack
    out = gates[:, 0:1] * y[:, 0:out_dim]
    for e in range(1, n_e):                                            # static
        out = out + gates[:, e:e + 1] * y[:, e * out_dim:(e + 1) * out_dim]
    return out                                                         # [T, out]


def _pair_moe_kernel(xs_ref, wg1_ref, wp1_ref, bp1_ref, wg2_ref, wp2_ref,
                     bp2_ref, out_ref):
    xs = xs_ref[...]                                                   # bf16

    h = _moe_combine(xs, wg1_ref[...], wp1_ref[...], bp1_ref[...])     # fc
    h = jnp.maximum(h, 0.0)                                            # relu (f32)
    # TODO(synk): F.dropout and the noisy-gating noise are training-mode
    # stochastic ops; the eval-mode forward (identity / clean logits) is
    # implemented here.
    h = h.astype(jnp.bfloat16)

    z = _moe_combine(h, wg2_ref[...], wp2_ref[...], bp2_ref[...])      # fc2

    m = jnp.max(z, axis=1, keepdims=True)                              # log_softmax
    s = z - m
    lse = jnp.log(jnp.sum(jnp.exp(s), axis=1, keepdims=True))
    out_ref[...] = s - lse


def pair_moe(xs_bf16, wg1, wp1, bp1, wg2, wp2, bp2):
    p_pad, d1 = xs_bf16.shape
    num_p = p_pad // TILE_P
    out_dim = wp2.shape[1] // wg2.shape[1]

    def full2d(arr):
        return pl.BlockSpec(arr.shape, lambda p: (0, 0))

    grid_spec = pltpu.PrefetchScalarGridSpec(
        num_scalar_prefetch=0,
        grid=(num_p,),
        in_specs=[
            pl.BlockSpec((TILE_P, d1), lambda p: (p, 0)),
            full2d(wg1), full2d(wp1), full2d(bp1),
            full2d(wg2), full2d(wp2), full2d(bp2),
        ],
        out_specs=pl.BlockSpec((TILE_P, out_dim), lambda p: (p, 0)),
    )
    return pl.pallas_call(
        _pair_moe_kernel,
        out_shape=jax.ShapeDtypeStruct((p_pad, out_dim), jnp.float32),
        grid_spec=grid_spec,
        compiler_params=pltpu.CompilerParams(
            dimension_semantics=("parallel",),
            vmem_limit_bytes=VMEM_LIMIT),
    )(xs_bf16, wg1, wp1, bp1, wg2, wp2, bp2)


# ----------------------------------------------------------------------------
# Glue: adjacency normalization, padding, block-sparsity tables, pair gather.
# ----------------------------------------------------------------------------
def build_norm_adj(edge_index, num_nodes):
    """gcn_norm (add_self_loops=True, improved=False) as a dense matrix.
    NOTE: degrees are taken from dst (PyG col-based); symmetric edge_index
    assumed for a symmetric normalization."""
    src, dst = edge_index[0], edge_index[1]
    loop = jnp.arange(num_nodes, dtype=edge_index.dtype)
    src = jnp.concatenate([src, loop])
    dst = jnp.concatenate([dst, loop])
    w = jnp.ones(src.shape[0], jnp.float32)
    deg = jnp.zeros(num_nodes, jnp.float32).at[dst].add(w)
    dinv = jnp.where(deg > 0, 1.0 / jnp.sqrt(deg), 0.0)
    nw = dinv[src] * w * dinv[dst]
    return jnp.zeros((num_nodes, num_nodes), jnp.float32).at[dst, src].add(nw)


def build_block_tables(a_pad):
    """Host-side block-CSR of A_hat: per row-tile, the nonzero column tiles
    (padded with the last valid index). Drives the scalar-prefetched index_maps."""
    n_pad = a_pad.shape[0]
    num_i, num_kt = n_pad // TILE_I, n_pad // TILE_K
    a_np = np.asarray(jax.device_get(a_pad))
    blk_nz = (a_np != 0).reshape(num_i, TILE_I, num_kt, TILE_K).any(axis=(1, 3))
    cnts = blk_nz.sum(axis=1).astype(np.int32)
    max_k = max(int(cnts.max()), 1)
    idx = np.zeros((num_i, max_k), np.int32)
    for r in range(num_i):
        nz = np.nonzero(blk_nz[r])[0]
        if nz.size:
            idx[r, :nz.size] = nz
            idx[r, nz.size:] = nz[-1]
    return jnp.asarray(cnts), jnp.asarray(idx)


def gcn_sim_forward(x, edge_index, nodes, params):
    n = x.shape[0]
    a_hat = build_norm_adj(edge_index, n)

    # Pad the node dimension for tiling; stream MXU operands as bf16.
    n_pad = ((n + TILE_K - 1) // TILE_K) * TILE_K
    a_pad = jnp.zeros((n_pad, n_pad), jnp.float32).at[:n, :n].set(a_hat)
    x_pad = jnp.zeros((n_pad, x.shape[1]), jnp.float32).at[:n, :].set(x)
    a_b = a_pad.astype(jnp.bfloat16)
    x_b = x_pad.astype(jnp.bfloat16)

    blk_cnt, blk_idx = build_block_tables(a_pad)     # shared by both convs

    # conv1 (+relu, dropout=identity) and conv2.
    h1 = gcn_conv(a_b, x_b, params["w1"], params["b1"], blk_cnt, blk_idx,
                  apply_relu=True, out_dtype=jnp.bfloat16)
    h2 = gcn_conv(a_b, h1, params["w2"], params["b2"], blk_cnt, blk_idx,
                  apply_relu=False, out_dtype=jnp.float32)[:n]

    # Pair-feature construction (eval branch: i over len(nodes), j over 50).
    m = nodes.shape[0]
    left = jnp.repeat(nodes, 50)
    right = jnp.tile(nodes[:50], m)
    x_sim = jnp.concatenate([h2[left], h2[right]], axis=-1)   # [m*50, 32] f32

    # Pair MoE head (fc -> relu -> fc2 -> log_softmax).
    p = x_sim.shape[0]
    p_pad = ((p + TILE_P - 1) // TILE_P) * TILE_P
    xs_pad = jnp.zeros((p_pad, x_sim.shape[1]), jnp.bfloat16).at[:p].set(
        x_sim.astype(jnp.bfloat16))
    logp = pair_moe(xs_pad, params["wg1"], params["wp1"], params["bp1"],
                    params["wg2"], params["wp2"], params["bp2"])[:p]
    return logp, x_sim


# ----------------------------------------------------------------------------
# Pure-JAX reference (mirrors the kernel's bf16/f32 dtype choices).
# ----------------------------------------------------------------------------
def ref_gcn_pairs(x, a_hat, nodes, pr):
    a_b, x_b = a_hat.astype(jnp.bfloat16), x.astype(jnp.bfloat16)
    xw1 = jnp.dot(x_b, pr["w1"], preferred_element_type=jnp.float32).astype(jnp.bfloat16)
    h1 = jnp.maximum(jnp.dot(a_b, xw1, preferred_element_type=jnp.float32)
                     + pr["b1"], 0.0).astype(jnp.bfloat16)
    xw2 = jnp.dot(h1, pr["w2"], preferred_element_type=jnp.float32).astype(jnp.bfloat16)
    h2 = jnp.dot(a_b, xw2, preferred_element_type=jnp.float32) + pr["b2"]
    left = jnp.repeat(nodes, 50)
    right = jnp.tile(nodes[:50], nodes.shape[0])
    return jnp.concatenate([h2[left], h2[right]], axis=-1)


def ref_pair_moe(x_sim, pr):
    def moe(xb, wg, wp, bp):
        n_e = wg.shape[1]
        out_dim = wp.shape[1] // n_e
        logits = jnp.dot(xb, wg, preferred_element_type=jnp.float32)
        iota = jax.lax.broadcasted_iota(jnp.int32, logits.shape, 1)
        rmax = jnp.max(logits, axis=1, keepdims=True)
        first = jnp.min(jnp.where(logits == rmax, iota, n_e), axis=1, keepdims=True)
        gates = (iota == first).astype(jnp.float32)
        y = (jnp.dot(xb, wp, preferred_element_type=jnp.float32) + bp)
        y = y.reshape(xb.shape[0], n_e, out_dim)
        srt = jnp.sort(logits, axis=1)
        return jnp.sum(gates[:, :, None] * y, axis=1), srt[:, -1] - srt[:, -2]

    xs_b = x_sim.astype(jnp.bfloat16)
    h, m1 = moe(xs_b, pr["wg1"], pr["wp1"], pr["bp1"])
    h = jnp.maximum(h, 0.0).astype(jnp.bfloat16)
    z, m2 = moe(h, pr["wg2"], pr["wp2"], pr["bp2"])
    stable = (m1 > 1e-2) & (m2 > 1e-2)   # rows whose gate choice is unambiguous
    return jax.nn.log_softmax(z, axis=1), stable


# ----------------------------------------------------------------------------
if __name__ == "__main__":
    N, IN_FEATS = 64, 8
    C1, C2 = 32, 16                  # GCNConv(in,32), GCNConv(32,16)
    FC1_OUT, FC2_OUT = 16, 2         # MoE(32,16), MoE(16,2)
    E = NUM_EXPERTS
    D_SIM = 2 * C2                   # pair-feature width (concat of two h2 rows)

    key = jax.random.PRNGKey(0)
    ks = jax.random.split(key, 12)

    x = jax.random.normal(ks[0], (N, IN_FEATS), jnp.float32)

    # Undirected ring graph, edge_index [2, 2N].
    fwd_e = jnp.stack([jnp.arange(N), (jnp.arange(N) + 1) % N])
    edge_index = jnp.concatenate([fwd_e, fwd_e[::-1]], axis=1).astype(jnp.int32)

    # Eval branch uses nodes[j] for j < 50, so provide 50 node ids.
    nodes = jax.random.permutation(ks[1], N)[:50].astype(jnp.int32)

    # Deterministic synthetic parameters (shapes follow the module).
    w1 = 0.3 * jax.random.normal(ks[2], (IN_FEATS, C1), jnp.float32)
    b1 = 0.1 * jax.random.normal(ks[3], (1, C1), jnp.float32)
    w2 = 0.3 * jax.random.normal(ks[4], (C1, C2), jnp.float32)
    b2 = 0.1 * jax.random.normal(ks[5], (1, C2), jnp.float32)
    wg1 = 0.5 * jax.random.normal(ks[6], (D_SIM, E), jnp.float32)
    ew1 = 0.3 * jax.random.normal(ks[7], (E, D_SIM, FC1_OUT), jnp.float32)
    eb1 = 0.1 * jax.random.normal(ks[8], (E, FC1_OUT), jnp.float32)
    wg2 = 0.5 * jax.random.normal(ks[9], (FC1_OUT, E), jnp.float32)
    ew2 = 0.3 * jax.random.normal(ks[10], (E, FC1_OUT, FC2_OUT), jnp.float32)
    eb2 = 0.1 * jax.random.normal(ks[11], (E, FC2_OUT), jnp.float32)

    params = {
        # MXU operands stored/streamed in bf16 (f32 accumulation in-kernel).
        "w1": w1.astype(jnp.bfloat16), "b1": b1,
        "w2": w2.astype(jnp.bfloat16), "b2": b2,
        "wg1": wg1.astype(jnp.bfloat16),
        "wp1": jnp.transpose(ew1, (1, 0, 2)).reshape(D_SIM, E * FC1_OUT).astype(jnp.bfloat16),
        "bp1": eb1.reshape(1, E * FC1_OUT),
        "wg2": wg2.astype(jnp.bfloat16),
        "wp2": jnp.transpose(ew2, (1, 0, 2)).reshape(FC1_OUT, E * FC2_OUT).astype(jnp.bfloat16),
        "bp2": eb2.reshape(1, E * FC2_OUT),
    }

    logp, x_sim = gcn_sim_forward(x, edge_index, nodes, params)
    logp = jax.block_until_ready(logp)
    x_sim = jax.block_until_ready(x_sim)

    P = nodes.shape[0] * 50
    assert logp.shape == (P, FC2_OUT)
    assert x_sim.shape == (P, D_SIM)
    assert bool(jnp.all(jnp.isfinite(logp)))
    # log_softmax rows must sum (in prob space) to ~1.
    assert bool(jnp.max(jnp.abs(jnp.sum(jnp.exp(logp), axis=1) - 1.0)) < 1e-4)

    # Pure-JAX reference checks (same dtype recipe as the kernels).
    a_hat = build_norm_adj(edge_index, N)
    x_sim_ref = ref_gcn_pairs(x, a_hat, nodes, params)
    assert bool(jnp.max(jnp.abs(x_sim - x_sim_ref)) < 3e-2)

    logp_ref, stable = ref_pair_moe(x_sim, params)   # same x_sim the kernel consumed
    diff = jnp.where(stable[:, None], jnp.abs(logp - logp_ref), 0.0)
    assert int(jnp.sum(stable)) > 100
    assert bool(jnp.max(diff) < 2e-2)

    print("KERNEL_OK")
</pallas_src>

<mosaic_0001>
module attributes {stable_mosaic.version = 11 : i64} {
  func.func @_gcn_conv_kernel(%arg0: i32, %arg1: i32, %arg2: memref<2xi32, #tpu.memory_space<smem>>, %arg3: memref<2x1xi32, #tpu.memory_space<smem>>, %arg4: memref<256x512xbf16, #tpu.memory_space<vmem>>, %arg5: memref<512x8xbf16, #tpu.memory_space<vmem>>, %arg6: memref<8x32xbf16, #tpu.memory_space<vmem>>, %arg7: memref<1x32xf32, #tpu.memory_space<vmem>>, %arg8: memref<256x32xbf16, #tpu.memory_space<vmem>>, %arg9: memref<256x32xf32, #tpu.memory_space<vmem>>) attributes {dimension_semantics = [#tpu.dimension_semantics<parallel>, #tpu.dimension_semantics<arbitrary>], iteration_bounds = array<i64: 2, 1>, scalar_prefetch = 2 : i64, scratch_operands = 1 : i64, tpu.core_type = #tpu.core_type<tc>, window_params = [{transform_indices = @transform_0, window_bounds = array<i64: 256, 512>}, {transform_indices = @transform_1, window_bounds = array<i64: 512, 8>}, {pipeline_mode = #tpu.pipeline_mode<synchronous>, transform_indices = @transform_2, window_bounds = array<i64: 8, 32>}, {pipeline_mode = #tpu.pipeline_mode<synchronous>, transform_indices = @transform_3, window_bounds = array<i64: 1, 32>}, {transform_indices = @transform_4, window_bounds = array<i64: 256, 32>}]} {
    %c0_i32 = arith.constant 0 : i32
    %0 = arith.cmpi eq, %arg1, %c0_i32 : i32
    %1 = arith.extui %0 : i1 to i32
    %c0_i32_0 = arith.constant 0 : i32
    %2 = arith.cmpi ne, %1, %c0_i32_0 : i32
    scf.if %2 {
      %cst = arith.constant 0.000000e+00 : f32
      %11 = vector.broadcast %cst : f32 to vector<256x32xf32>
      %c0 = arith.constant 0 : index
      %c0_4 = arith.constant 0 : index
      %12 = vector.load %arg9[%c0, %c0_4] : memref<256x32xf32, #tpu.memory_space<vmem>>, vector<256x32xf32>
      tpu.vector_store %arg9[%c0, %c0_4], %11 {strides = array<i32>} : memref<256x32xf32, #tpu.memory_space<vmem>>, vector<256x32xf32>,
    } else {
    }
    %3 = arith.index_cast %arg0 : i32 to index
    %4 = memref.load %arg2[%3] : memref<2xi32, #tpu.memory_space<smem>>
    %5 = arith.cmpi slt, %arg1, %4 : i32
    %6 = arith.extui %5 : i1 to i32
    %c0_i32_1 = arith.constant 0 : i32
    %7 = arith.cmpi ne, %6, %c0_i32_1 : i32
    scf.if %7 {
      %c0 = arith.constant 0 : index
      %c0_4 = arith.constant 0 : index
      %11 = vector.load %arg5[%c0, %c0_4] : memref<512x8xbf16, #tpu.memory_space<vmem>>, vector<512x8xbf16>
      %c0_5 = arith.constant 0 : index
      %c0_6 = arith.constant 0 : index
      %12 = vector.load %arg6[%c0_5, %c0_6] : memref<8x32xbf16, #tpu.memory_space<vmem>>, vector<8x32xbf16>
      %cst = arith.constant dense<0.000000e+00> : vector<512x32xf32>
      %13 = tpu.matmul %11, %12, %cst {dimension_numbers = #tpu.dot_dimension_numbers<[1], [0], [0], [1], [0, 0, 1, 1], [], []>} : vector<512x8xbf16>, vector<8x32xbf16>, vector<512x32xf32> -> vector<512x32xf32>
      %14 = arith.truncf %13 : vector<512x32xf32> to vector<512x32xbf16>
      %c0_7 = arith.constant 0 : index
      %c0_8 = arith.constant 0 : index
      %15 = vector.load %arg9[%c0_7, %c0_8] : memref<256x32xf32, #tpu.memory_space<vmem>>, vector<256x32xf32>
      %c0_9 = arith.constant 0 : index
      %c0_10 = arith.constant 0 : index
      %16 = vector.load %arg4[%c0_9, %c0_10] : memref<256x512xbf16, #tpu.memory_space<vmem>>, vector<256x512xbf16>
      %cst_11 = arith.constant dense<0.000000e+00> : vector<256x32xf32>
      %17 = tpu.matmul %16, %14, %cst_11 {dimension_numbers = #tpu.dot_dimension_numbers<[1], [0], [0], [1], [0, 0, 1, 1], [], []>} : vector<256x512xbf16>, vector<512x32xbf16>, vector<256x32xf32> -> vector<256x32xf32>
      %18 = arith.addf %15, %17 : vector<256x32xf32>
      %c0_12 = arith.constant 0 : index
      %c0_13 = arith.constant 0 : index
      %19 = vector.load %arg9[%c0_12, %c0_13] : memref<256x32xf32, #tpu.memory_space<vmem>>, vector<256x32xf32>
      tpu.vector_store %arg9[%c0_12, %c0_13], %18 {strides = array<i32>} : memref<256x32xf32, #tpu.memory_space<vmem>>, vector<256x32xf32>,
    } else {
    }
    %c0_i32_2 = arith.constant 0 : i32
    %8 = arith.cmpi eq, %arg1, %c0_i32_2 : i32
    %9 = arith.extui %8 : i1 to i32
    %c0_i32_3 = arith.constant 0 : i32
    %10 = arith.cmpi ne, %9, %c0_i32_3 : i32
    scf.if %10 {
      %c0 = arith.constant 0 : index
      %c0_4 = arith.constant 0 : index
      %11 = vector.load %arg9[%c0, %c0_4] : memref<256x32xf32, #tpu.memory_space<vmem>>, vector<256x32xf32>
      %c0_5 = arith.constant 0 : index
      %c0_6 = arith.constant 0 : index
      %12 = vector.load %arg7[%c0_5, %c0_6] : memref<1x32xf32, #tpu.memory_space<vmem>>, vector<1x32xf32>
      %13 = vector.broadcast %12 : vector<1x32xf32> to vector<256x32xf32>
      %14 = arith.addf %11, %13 : vector<256x32xf32>
      %cst = arith.constant 0.000000e+00 : f32
      %15 = vector.broadcast %cst : f32 to vector<256x32xf32>
      %16 = arith.maximumf %14, %15 : vector<256x32xf32>
      %17 = arith.truncf %16 : vector<256x32xf32> to vector<256x32xbf16>
      %c0_7 = arith.constant 0 : index
      %c0_8 = arith.constant 0 : index
      %18 = vector.load %arg8[%c0_7, %c0_8] : memref<256x32xbf16, #tpu.memory_space<vmem>>, vector<256x32xbf16>
      tpu.vector_store %arg8[%c0_7, %c0_8], %17 {strides = array<i32>} : memref<256x32xbf16, #tpu.memory_space<vmem>>, vector<256x32xbf16>,
    } else {
    }
    return
  }
  func.func @transform_0(%arg0: i32, %arg1: i32, %arg2: memref<2xi32, #tpu.memory_space<smem>>, %arg3: memref<2x1xi32, #tpu.memory_space<smem>>) -> (i32, i32) {
    %0 = arith.index_cast %arg0 : i32 to index
    %1 = arith.index_cast %arg1 : i32 to index
    %2 = memref.load %arg3[%0, %1] : memref<2x1xi32, #tpu.memory_space<smem>>
    %c0_i32 = arith.constant 0 : i32
    return %arg0, %2 : i32, i32
  }
  func.func @transform_1(%arg0: i32, %arg1: i32, %arg2: memref<2xi32, #tpu.memory_space<smem>>, %arg3: memref<2x1xi32, #tpu.memory_space<smem>>) -> (i32, i32) {
    %0 = arith.index_cast %arg0 : i32 to index
    %1 = arith.index_cast %arg1 : i32 to index
    %2 = memref.load %arg3[%0, %1] : memref<2x1xi32, #tpu.memory_space<smem>>
    %c0_i32 = arith.constant 0 : i32
    %c0_i32_0 = arith.constant 0 : i32
    return %2, %c0_i32 : i32, i32
  }
  func.func @transform_2(%arg0: i32, %arg1: i32, %arg2: memref<2xi32, #tpu.memory_space<smem>>, %arg3: memref<2x1xi32, #tpu.memory_space<smem>>) -> (i32, i32) {
    %c0_i32 = arith.constant 0 : i32
    %c0_i32_0 = arith.constant 0 : i32
    %c0_i32_1 = arith.constant 0 : i32
    return %c0_i32, %c0_i32_0 : i32, i32
  }
  func.func @transform_3(%arg0: i32, %arg1: i32, %arg2: memref<2xi32, #tpu.memory_space<smem>>, %arg3: memref<2x1xi32, #tpu.memory_space<smem>>) -> (i32, i32) {
    %c0_i32 = arith.constant 0 : i32
    %c0_i32_0 = arith.constant 0 : i32
    %c0_i32_1 = arith.constant 0 : i32
    return %c0_i32, %c0_i32_0 : i32, i32
  }
  func.func @transform_4(%arg0: i32, %arg1: i32, %arg2: memref<2xi32, #tpu.memory_space<smem>>, %arg3: memref<2x1xi32, #tpu.memory_space<smem>>) -> (i32, i32) {
    %c0_i32 = arith.constant 0 : i32
    %c0_i32_0 = arith.constant 0 : i32
    return %arg0, %c0_i32 : i32, i32
  }
}

</mosaic_0001>

<llo_original>
// kernel: tpu_custom_call.1
$region0: #{tpu_custom_call.1}
  #allocation0 [shape = 'u32[]', space=smem, size = 0x4, offset = 0x4, fixed_abs, tag = 'smem constant byte address 0x4 - core index']
  #allocation1 [shape = 'u32[144,128]{1,0:T(1,128)}', space=vmem, size = 0x12000, scoped, tag = 'internal scratch']
  #allocation2 [shape = 'f32[256,32]{1,0:T(8,128)}', space=vmem, size = 0x20000, scoped, tag = 'scratch operand']
  #allocation3 [shape = 's32[1]{0}', space=sflag, size = 0x4, scoped, tag = 'scoped memory for tpu_custom_call.1']
  #allocation4 [shape = 'u8[512]{0}', space=smem, size = 0x200, scoped, tag = 'prefetched SMEM operand 0']
  #allocation5 [shape = 'u8[1024]{0}', space=smem, size = 0x400, scoped, tag = 'prefetched SMEM operand 1']
  %s0 = inlined_call_operand.vmem [shape: s32[2], index: 0, kind: input, shape index: {}]
  %s1 = inlined_call_operand.vmem [shape: s32[2,1], index: 1, kind: input, shape index: {}]
  %s2 = inlined_call_operand.hbm [shape: bf16[512,512], index: 2, kind: input, shape index: {}]
  %s3 = inlined_call_operand.vmem [shape: bf16[512,8], index: 3, kind: input, shape index: {}]
  %s4 = inlined_call_operand.vmem [shape: bf16[8,32], index: 4, kind: input, shape index: {}]
  %s5 = inlined_call_operand.vmem [shape: f32[1,32], index: 5, kind: input, shape index: {}]
  %s6 = inlined_call_operand.vmem [shape: bf16[512,32], index: 6, kind: output, shape index: {}]
  %s7 = sld [smem:[#allocation0]]
  $region65: #{tpu_custom_call.1} parent=0
    _
  %s9 = ssub.s32 1, %s7
  %s10 = scalar_select 0, %s9, %s7
  %s11 = sshll.u32 %s0, 4
  %s12 = int_to_ptr.vmem [resolvable:$true] %s11
  %14 = dma.vmem_to_smem %s12, 16, [#allocation4], [#allocation3]
  %s15 = sshll.u32 %s1, 4
  %s16 = int_to_ptr.vmem [resolvable:$true] %s15
  %18 = dma.vmem_to_smem %s16, 32, [#allocation5], [#allocation3]
  %19 = dma.done [#allocation3], 48
  %20 = sfence
  $region1: #{tpu_custom_call.1} parent=0
    #allocation6 [shape = 'u8[524288]{0}', space=vmem, size = 0x80000, scoped, tag = 'input window, operand 2']
    #allocation7 [shape = 's32[2]{0}', space=sflag, size = 0x8, scoped, tag = 'scoped memory for tpu_custom_call.1']
    %21 = vsyncpa [#allocation7], 0
    %s22 = scalar_lea.sflag [#allocation7], 1
    %23 = vsyncpa %s22, 0
    loop: start=0, step=1, limit=4
    $region2: #{tpu_custom_call.1} parent=1 // loop_pre_header
      _
    $region3: #{tpu_custom_call.1} parent=1 // loop_header
      %s25 = sphi 0, %s29
      %p26 = scmp.ge.s32.totalorder %s25, 4
      %s32 = sphi 0, %s44
      %s33 = sphi 0, %s40
      %s34 = sphi 0, %s32
      %s35 = sphi 0, %s33
      %s36 = sphi 0, %s34
      %s37 = sphi 0, %s35
      %s65 = sphi 0, %s67
      %s68 = sphi 0, %s65
      %s69 = sphi 0, %s68
      %s85 = sphi 0, %s69
      %s107 = sphi 0, %s109
      %s110 = sphi 0, %s107
      %s111 = sphi 0, %s110
      %s127 = sphi 0, %s111
      %s131 = sphi 0, %s131
      %s133 = sphi 0, %s131
      %s134 = sphi 0, %s133
      %s148 = sphi 0, %s134
      %s152 = sphi 0, %s152
      %s154 = sphi 0, %s152
      %s155 = sphi 0, %s154
      %s169 = sphi 0, %s155
      %s175 = sphi 0, %s177
      %s178 = sphi 0, %s175
      %s179 = sphi 0, %s178
      %s195 = sphi 0, %s179
    $region4: #{tpu_custom_call.1} parent=1 // loop_header_branch
      %28 = sbr.rel (%p26) target = $region8
    $region5: #{tpu_custom_call.1} parent=1 // loop_body
      %s30 = ssub.s32 %s25, 1
      %s31 = ssub.s32 %s25, 2
      %s38 = sadd.s32 1, %s33
      %p39 = scmp.ge.s32.totalorder %s38, 1
      %s40 = scalar_select %p39, 0, %s38
      %s41 = sadd.s32 1, %s32
      %s42 = scalar_select %p39, %s41, %s32
      %p43 = scmp.ge.s32.totalorder %s42, 2
      %s44 = scalar_select %p43, 0, %s42
      %s45 = sshra.s32 %s33, 7
      %s46 = sand.u32 %s33, 127
      %s47 = sadd.s32 %s45, %s32
      %s48 = smul.u32 %s47, 128
      %s49 = sshra.s32 %s33, 7
      %s50 = sand.u32 %s33, 127
      %s51 = sadd.s32 %s48, %s50
      %s52 = sld [smem:[#allocation5 + %s51]]
      %s53 = sshra.s32 %s40, 7
      %s54 = sand.u32 %s40, 127
      %s55 = sadd.s32 %s53, %s44
      %s56 = smul.u32 %s55, 128
      %s57 = sshra.s32 %s40, 7
      %s58 = sand.u32 %s40, 127
      %s59 = sadd.s32 %s56, %s58
      %s60 = sld [smem:[#allocation5 + %s59]]
      %s61 = ssub.s32 %s32, %s44
      %s62 = ssub.s32 %s52, %s60
      %s63 = sor.u32 %s61, %s62
      %p64 = scmp.eq.s32.totalorder %s63, 0
      %s66 = sadd.s32 %s65, 1
      %s67 = scalar_select %p64, %s65, %s66
      %p70 = pneg %p64
      %p71 = scmp.eq.s32.totalorder %s25, 1
      %p72 = por %p70, %p71
      %p73 = scmp.ne.s32.totalorder %s65, %s68
      %p74 = scmp.eq.s32.totalorder %s25, 0
      %p75 = por %p73, %p74
      %p76 = scmp.ne.s32.totalorder %s65, %s68
      %p77 = scmp.eq.s32.totalorder %s30, 1
      %p78 = por %p76, %p77
      %p79 = scmp.ne.s32.totalorder %s68, %s69
      %p80 = scmp.eq.s32.totalorder %s30, 0
      %p81 = por %p79, %p80
      %p82 = scmp.ne.s32.totalorder %s68, %s69
      %p83 = scmp.eq.s32.totalorder %s31, 1
      %p84 = por %p82, %p83
      %p86 = scmp.ne.s32.totalorder %s69, %s85
      %p87 = scmp.eq.s32.totalorder %s31, 0
      %p88 = por %p86, %p87
      %s89 = sshra.s32 %s33, 7
      %s90 = sand.u32 %s33, 127
      %s91 = sadd.s32 %s89, %s32
      %s92 = smul.u32 %s91, 128
      %s93 = sshra.s32 %s33, 7
      %s94 = sand.u32 %s33, 127
      %s95 = sadd.s32 %s92, %s94
      %s96 = sld [smem:[#allocation5 + %s95]]
      %s97 = sshra.s32 %s40, 7
      %s98 = sand.u32 %s40, 127
      %s99 = sadd.s32 %s97, %s44
      %s100 = smul.u32 %s99, 128
      %s101 = sshra.s32 %s40, 7
      %s102 = sand.u32 %s40, 127
      %s103 = sadd.s32 %s100, %s102
      %s104 = sld [smem:[#allocation5 + %s103]]
      %s105 = ssub.s32 %s96, %s104
      %p106 = scmp.eq.s32.totalorder %s105, 0
      %s108 = sadd.s32 %s107, 1
      %s109 = scalar_select %p106, %s107, %s108
      %p112 = pneg %p106
      %p113 = scmp.eq.s32.totalorder %s25, 1
      %p114 = por %p112, %p113
      %p115 = scmp.ne.s32.totalorder %s107, %s110
      %p116 = scmp.eq.s32.totalorder %s25, 0
      %p117 = por %p115, %p116
      %p118 = scmp.ne.s32.totalorder %s107, %s110
      %p119 = scmp.eq.s32.totalorder %s30, 1
      %p120 = por %p118, %p119
      %p121 = scmp.ne.s32.totalorder %s110, %s111
      %p122 = scmp.eq.s32.totalorder %s30, 0
      %p123 = por %p121, %p122
      %p124 = scmp.ne.s32.totalorder %s110, %s111
      %p125 = scmp.eq.s32.totalorder %s31, 1
      %p126 = por %p124, %p125
      %p128 = scmp.ne.s32.totalorder %s111, %s127
      %p129 = scmp.eq.s32.totalorder %s31, 0
      %p130 = por %p128, %p129
      %s132 = sadd.s32 %s131, 1
      %p135 = scmp.eq.s32.totalorder %s25, 1
      %p136 = scmp.ne.s32.totalorder %s131, %s133
      %p137 = scmp.eq.s32.totalorder %s25, 0
      %p138 = por %p136, %p137
      %p139 = scmp.ne.s32.totalorder %s131, %s133
      %p140 = scmp.eq.s32.totalorder %s30, 1
      %p141 = por %p139, %p140
      %p142 = scmp.ne.s32.totalorder %s133, %s134
      %p143 = scmp.eq.s32.totalorder %s30, 0
      %p144 = por %p142, %p143
      %p145 = scmp.ne.s32.totalorder %s133, %s134
      %p146 = scmp.eq.s32.totalorder %s31, 1
      %p147 = por %p145, %p146
      %p149 = scmp.ne.s32.totalorder %s134, %s148
      %p150 = scmp.eq.s32.totalorder %s31, 0
      %p151 = por %p149, %p150
      %s153 = sadd.s32 %s152, 1
      %p156 = scmp.eq.s32.totalorder %s25, 1
      %p157 = scmp.ne.s32.totalorder %s152, %s154
      %p158 = scmp.eq.s32.totalorder %s25, 0
      %p159 = por %p157, %p158
      %p160 = scmp.ne.s32.totalorder %s152, %s154
      %p161 = scmp.eq.s32.totalorder %s30, 1
      %p162 = por %p160, %p161
      %p163 = scmp.ne.s32.totalorder %s154, %s155
      %p164 = scmp.eq.s32.totalorder %s30, 0
      %p165 = por %p163, %p164
      %p166 = scmp.ne.s32.totalorder %s154, %s155
      %p167 = scmp.eq.s32.totalorder %s31, 1
      %p168 = por %p166, %p167
      %p170 = scmp.ne.s32.totalorder %s155, %s169
      %p171 = scmp.eq.s32.totalorder %s31, 0
      %p172 = por %p170, %p171
      %s173 = ssub.s32 %s32, %s44
      %p174 = scmp.eq.s32.totalorder %s173, 0
      %s176 = sadd.s32 %s175, 1
      %s177 = scalar_select %p174, %s175, %s176
      %p180 = pneg %p174
      %p181 = scmp.eq.s32.totalorder %s25, 1
      %p182 = por %p180, %p181
      %p183 = scmp.ne.s32.totalorder %s175, %s178
      %p184 = scmp.eq.s32.totalorder %s25, 0
      %p185 = por %p183, %p184
      %p186 = scmp.ne.s32.totalorder %s175, %s178
      %p187 = scmp.eq.s32.totalorder %s30, 1
      %p188 = por %p186, %p187
      %p189 = scmp.ne.s32.totalorder %s178, %s179
      %p190 = scmp.eq.s32.totalorder %s30, 0
      %p191 = por %p189, %p190
      %p192 = scmp.ne.s32.totalorder %s178, %s179
      %p193 = scmp.eq.s32.totalorder %s31, 1
      %p194 = por %p192, %p193
      %p196 = scmp.ne.s32.totalorder %s179, %s195
      %p197 = scmp.eq.s32.totalorder %s31, 0
      %p198 = por %p196, %p197
      %p199 = scmp.le.s32.totalorder 1, %s25
      %p200 = scmp.lt.s32.totalorder %s25, 3
      %p201 = pnand %p199, %p200
      %p202 = pneg %p201
      // Predicated region
      $region9: #{tpu_custom_call.1} parent=5 // pred_check
        _
      $region10: #{tpu_custom_call.1} parent=5 // pred_check_branch
        %204 = sbr.rel (%p201) target = $region12
      $region11: #{tpu_custom_call.1} parent=5 // pred_region
        %s205 = ssub.s32 %s25, 1
        // Predicated region
        $region13: #{tpu_custom_call.1} parent=11 // pred_check
          %p206 = pneg %p144
        $region14: #{tpu_custom_call.1} parent=11 // pred_check_branch
          %208 = sbr.rel (%p206) target = $region16
        $region15: #{tpu_custom_call.1} parent=11 // pred_region
          _
        $region16: #{tpu_custom_call.1} parent=11 // pred_fallthru
          _
        // Predicated region
        $region17: #{tpu_custom_call.1} parent=11 // pred_check
          %p209 = pneg %p165
        $region18: #{tpu_custom_call.1} parent=11 // pred_check_branch
          %211 = sbr.rel (%p209) target = $region20
        $region19: #{tpu_custom_call.1} parent=11 // pred_region
          _
        $region20: #{tpu_custom_call.1} parent=11 // pred_fallthru
          _
      $region12: #{tpu_custom_call.1} parent=5 // pred_fallthru
        _
      %p212 = scmp.lt.s32.totalorder %s25, 2
      // Predicated region
      $region21: #{tpu_custom_call.1} parent=5 // pred_check
        %p213 = pneg %p212
      $region22: #{tpu_custom_call.1} parent=5 // pred_check_branch
        %215 = sbr.rel (%p213) target = $region24
      $region23: #{tpu_custom_call.1} parent=5 // pred_region
        // Predicated region
        $region25: #{tpu_custom_call.1} parent=23 // pred_check
          %p216 = pneg %p75
        $region26: #{tpu_custom_call.1} parent=23 // pred_check_branch
          %218 = sbr.rel (%p216) target = $region28
        $region27: #{tpu_custom_call.1} parent=23 // pred_region
          %s219 = sand.u32 %s65, 1
          %s220 = scalar_lea.sflag [#allocation7], %s219
          %s221 = sand.u32 %s65, 1
          %s222 = smul.addr %s221, 512
          %s223 = scalar_lea.vmem [#allocation6], %s222
          %s224 = sshra.s32 %s33, 7
          %s225 = sand.u32 %s33, 127
          %s226 = sadd.s32 %s224, %s32
          %s227 = smul.u32 %s226, 128
          %s228 = sshra.s32 %s33, 7
          %s229 = sand.u32 %s33, 127
          %s230 = sadd.s32 %s227, %s229
          %s231 = sld [smem:[#allocation5 + %s230]]
          %s232 = smul.u32 32, %s32
          %s233 = smul.u32 4, %s231
          %s235 = ssub.s32 8192, 8192
          %236 = vsyncadd %s220, %s235
          %s237 = smul.addr %s232, 4
          %s238 = sadd.s32 %s233, %s237
          %s239 = smul.addr %s238, 64
          %s240 = scalar_lea.hbm %s2, %s239
          %s241 = sshll.u32 %s223, 4
          %s242 = int_to_ptr.vmem [resolvable:$true] %s241
          %247 = dma.hbm_to_vmem [thread:$0]  %s240, 8192, %s242, %s220, 256, 256, 16
        $region28: #{tpu_custom_call.1} parent=23 // pred_fallthru
          _
        // Predicated region
        $region29: #{tpu_custom_call.1} parent=23 // pred_check
          %p248 = pneg %p117
        $region30: #{tpu_custom_call.1} parent=23 // pred_check_branch
          %250 = sbr.rel (%p248) target = $region32
        $region31: #{tpu_custom_call.1} parent=23 // pred_region
          %s251 = sshra.s32 %s33, 7
          %s252 = sand.u32 %s33, 127
          %s253 = sadd.s32 %s251, %s32
          %s254 = smul.u32 %s253, 128
          %s255 = sshra.s32 %s33, 7
          %s256 = sand.u32 %s33, 127
          %s257 = sadd.s32 %s254, %s256
          %s258 = sld [smem:[#allocation5 + %s257]]
          %s259 = smul.u32 64, %s258
          %p260 = scmp.lt.s32.totalorder %s259, 63
          %s261 = scalar_select %p260, %s259, 63
          %s262 = smul.addr %s261, 4
          %s263 = scalar_lea.vmem %s3, %s262
          %s264 = sshra.s32 %s33, 7
          %s265 = sand.u32 %s33, 127
          %s266 = sadd.s32 %s264, %s32
          %s267 = smul.u32 %s266, 128
          %s268 = sshra.s32 %s33, 7
          %s269 = sand.u32 %s33, 127
          %s270 = sadd.s32 %s267, %s269
          %s271 = sld [smem:[#allocation5 + %s270]]
          %s272 = smul.u32 64, %s271
        $region32: #{tpu_custom_call.1} parent=23 // pred_fallthru
          _
      $region24: #{tpu_custom_call.1} parent=5 // pred_fallthru
        _
      %p273 = scmp.le.s32.totalorder 1, %s25
      %p274 = scmp.lt.s32.totalorder %s25, 3
      %p275 = pnand %p273, %p274
      %p276 = pneg %p275
      // Predicated region
      $region33: #{tpu_custom_call.1} parent=5 // pred_check
        _
      $region34: #{tpu_custom_call.1} parent=5 // pred_check_branch
        %278 = sbr.rel (%p275) target = $region36
      $region35: #{tpu_custom_call.1} parent=5 // pred_region
        %s279 = ssub.s32 %s25, 1
        %s280 = sand.u32 %s68, 1
        %s281 = scalar_lea.sflag [#allocation7], %s280
        %s282 = sand.u32 %s68, 1
        %s283 = smul.addr %s282, 512
        %s284 = scalar_lea.vmem [#allocation6], %s283
        // Predicated region
        $region37: #{tpu_custom_call.1} parent=35 // pred_check
          %p285 = pneg %p81
        $region38: #{tpu_custom_call.1} parent=35 // pred_check_branch
          %287 = sbr.rel (%p285) target = $region40
        $region39: #{tpu_custom_call.1} parent=35 // pred_region
          %288 = dma.done %s281, 8192
        $region40: #{tpu_custom_call.1} parent=35 // pred_fallthru
          _
        %s289 = sand.u32 %s68, 1
        %s290 = scalar_lea.sflag [#allocation7], %s289
        %s291 = sand.u32 %s68, 1
        %s292 = smul.addr %s291, 512
        %s293 = scalar_lea.vmem [#allocation6], %s292
        %p294 = pneg %p81
        %p295 = pneg %p78
        %s296 = sshra.s32 %s35, 7
        %s297 = sand.u32 %s35, 127
        %s298 = sadd.s32 %s296, %s34
        %s299 = smul.u32 %s298, 128
        %s300 = sshra.s32 %s35, 7
        %s301 = sand.u32 %s35, 127
        %s302 = sadd.s32 %s299, %s301
        %s303 = sld [smem:[#allocation5 + %s302]]
        %s304 = smul.u32 64, %s303
        %p305 = scmp.lt.s32.totalorder %s304, 63
        %s306 = scalar_select %p305, %s304, 63
        %s307 = smul.addr %s306, 4
        %s308 = scalar_lea.vmem %s3, %s307
        %p309 = pneg %p123
        %p310 = pneg %p120
        %p311 = pneg %p144
        %p312 = pneg %p141
        %p313 = pneg %p165
        %p314 = pneg %p162
        %p315 = pneg %p191
        %p316 = pneg %p188
        %s317 = smul.u32 32, %s34
        %p318 = scmp.lt.s32.totalorder %s317, 63
        %s319 = scalar_select %p318, %s317, 63
        %s320 = smul.addr %s319, 4
        %s321 = scalar_lea.vmem %s6, %s320
        %s322 = sshra.s32 %s35, 7
        %s323 = sand.u32 %s35, 127
        %s324 = sadd.s32 %s322, %s34
        %s325 = smul.u32 %s324, 128
        %s326 = sshra.s32 %s35, 7
        %s327 = sand.u32 %s35, 127
        %s328 = sadd.s32 %s325, %s327
        %s329 = sld [smem:[#allocation5 + %s328]]
        %s330 = smul.u32 32, %s34
        %s331 = smul.u32 4, %s329
        %s332 = sshra.s32 %s35, 7
        %s333 = sand.u32 %s35, 127
        %s334 = sadd.s32 %s332, %s34
        %s335 = smul.u32 %s334, 128
        %s336 = sshra.s32 %s35, 7
        %s337 = sand.u32 %s35, 127
        %s338 = sadd.s32 %s335, %s337
        %s339 = sld [smem:[#allocation5 + %s338]]
        %s340 = smul.u32 64, %s339
        %p341 = scmp.lt.s32.totalorder %s340, 63
        %s342 = scalar_select %p341, %s340, 63
        %s343 = smul.addr %s342, 4
        %s344 = scalar_lea.vmem %s3, %s343
        %s345 = sshra.s32 %s35, 7
        %s346 = sand.u32 %s35, 127
        %s347 = sadd.s32 %s345, %s34
        %s348 = smul.u32 %s347, 128
        %s349 = sshra.s32 %s35, 7
        %s350 = sand.u32 %s35, 127
        %s351 = sadd.s32 %s348, %s350
        %s352 = sld [smem:[#allocation5 + %s351]]
        %s353 = smul.u32 64, %s352
        %s354 = smul.u32 32, %s34
        %p355 = scmp.lt.s32.totalorder %s354, 63
        %s356 = scalar_select %p355, %s354, 63
        %s357 = smul.addr %s356, 4
        %s358 = scalar_lea.vmem %s6, %s357
        %s359 = smul.u32 32, %s34
        %p361 = scmp.eq.s32.totalorder %s35, 0
        // Predicated region
        $region41: #{tpu_custom_call.1} parent=35 // pred_check
          %p362 = pneg %p361
        $region42: #{tpu_custom_call.1} parent=35 // pred_check_branch
          %364 = sbr.rel (%p362) target = $region44
        $region43: #{tpu_custom_call.1} parent=35 // pred_region
          %vm365 = vcmask 261120
          %366 = vst.msk [vmem:[#allocation2] sm:$0xff] %vm365, 0.0
          %367 = vst.msk [vmem:[#allocation2 + $0x8] sm:$0xff] %vm365, 0.0
          %368 = vst.msk [vmem:[#allocation2 + $0x10] sm:$0xff] %vm365, 0.0
          %369 = vst.msk [vmem:[#allocation2 + $0x18] sm:$0xff] %vm365, 0.0
          %370 = vst.msk [vmem:[#allocation2 + $0x20] sm:$0xff] %vm365, 0.0
          %371 = vst.msk [vmem:[#allocation2 + $0x28] sm:$0xff] %vm365, 0.0
          %372 = vst.msk [vmem:[#allocation2 + $0x30] sm:$0xff] %vm365, 0.0
          %373 = vst.msk [vmem:[#allocation2 + $0x38] sm:$0xff] %vm365, 0.0
          %374 = vst.msk [vmem:[#allocation2 + $0x40] sm:$0xff] %vm365, 0.0
          %375 = vst.msk [vmem:[#allocation2 + $0x48] sm:$0xff] %vm365, 0.0
          %376 = vst.msk [vmem:[#allocation2 + $0x50] sm:$0xff] %vm365, 0.0
          %377 = vst.msk [vmem:[#allocation2 + $0x58] sm:$0xff] %vm365, 0.0
          %378 = vst.msk [vmem:[#allocation2 + $0x60] sm:$0xff] %vm365, 0.0
          %379 = vst.msk [vmem:[#allocation2 + $0x68] sm:$0xff] %vm365, 0.0
          %380 = vst.msk [vmem:[#allocation2 + $0x70] sm:$0xff] %vm365, 0.0
          %381 = vst.msk [vmem:[#allocation2 + $0x78] sm:$0xff] %vm365, 0.0
          %382 = vst.msk [vmem:[#allocation2 + $0x80] sm:$0xff] %vm365, 0.0
          %383 = vst.msk [vmem:[#allocation2 + $0x88] sm:$0xff] %vm365, 0.0
          %384 = vst.msk [vmem:[#allocation2 + $0x90] sm:$0xff] %vm365, 0.0
          %385 = vst.msk [vmem:[#allocation2 + $0x98] sm:$0xff] %vm365, 0.0
          %386 = vst.msk [vmem:[#allocation2 + $0xa0] sm:$0xff] %vm365, 0.0
          %387 = vst.msk [vmem:[#allocation2 + $0xa8] sm:$0xff] %vm365, 0.0
          %388 = vst.msk [vmem:[#allocation2 + $0xb0] sm:$0xff] %vm365, 0.0
          %389 = vst.msk [vmem:[#allocation2 + $0xb8] sm:$0xff] %vm365, 0.0
          %390 = vst.msk [vmem:[#allocation2 + $0xc0] sm:$0xff] %vm365, 0.0
          %391 = vst.msk [vmem:[#allocation2 + $0xc8] sm:$0xff] %vm365, 0.0
          %392 = vst.msk [vmem:[#allocation2 + $0xd0] sm:$0xff] %vm365, 0.0
          %393 = vst.msk [vmem:[#allocation2 + $0xd8] sm:$0xff] %vm365, 0.0
          %394 = vst.msk [vmem:[#allocation2 + $0xe0] sm:$0xff] %vm365, 0.0
          %395 = vst.msk [vmem:[#allocation2 + $0xe8] sm:$0xff] %vm365, 0.0
          %396 = vst.msk [vmem:[#allocation2 + $0xf0] sm:$0xff] %vm365, 0.0
          %397 = vst.msk [vmem:[#allocation2 + $0xf8] sm:$0xff] %vm365, 0.0
        $region44: #{tpu_custom_call.1} parent=35 // pred_fallthru
          _
        %s398 = sld [smem:[#allocation4 + %s34]]
        %p399 = scmp.lt.s32.totalorder %s35, %s398
        // Predicated region
        $region45: #{tpu_custom_call.1} parent=35 // pred_check
          %p400 = pneg %p399
        $region46: #{tpu_custom_call.1} parent=35 // pred_check_branch
          %402 = sbr.rel (%p400) target = $region48
        $region47: #{tpu_custom_call.1} parent=35 // pred_region
          %v403 = vld [vmem:[%s344] sm:$0xf]
          %v404 = vld [vmem:[%s344 + $0x4] sm:$0xf]
          %v405 = vld [vmem:[%s344 + $0x8] sm:$0xf]
          %v406 = vld [vmem:[%s344 + $0xc] sm:$0xf]
          %v407 = vld [vmem:[%s344 + $0x10] sm:$0xf]
          %v408 = vld [vmem:[%s344 + $0x14] sm:$0xf]
          %v409 = vld [vmem:[%s344 + $0x18] sm:$0xf]
          %v410 = vld [vmem:[%s344 + $0x1c] sm:$0xf]
          %v411 = vld [vmem:[%s344 + $0x20] sm:$0xf]
          %v412 = vld [vmem:[%s344 + $0x24] sm:$0xf]
          %v413 = vld [vmem:[%s344 + $0x28] sm:$0xf]
          %v414 = vld [vmem:[%s344 + $0x2c] sm:$0xf]
          %v415 = vld [vmem:[%s344 + $0x30] sm:$0xf]
          %v416 = vld [vmem:[%s344 + $0x34] sm:$0xf]
          %v417 = vld [vmem:[%s344 + $0x38] sm:$0xf]
          %v418 = vld [vmem:[%s344 + $0x3c] sm:$0xf]
          %v419 = vld [vmem:[%s344 + $0x40] sm:$0xf]
          %v420 = vld [vmem:[%s344 + $0x44] sm:$0xf]
          %v421 = vld [vmem:[%s344 + $0x48] sm:$0xf]
          %v422 = vld [vmem:[%s344 + $0x4c] sm:$0xf]
          %v423 = vld [vmem:[%s344 + $0x50] sm:$0xf]
          %v424 = vld [vmem:[%s344 + $0x54] sm:$0xf]
          %v425 = vld [vmem:[%s344 + $0x58] sm:$0xf]
          %v426 = vld [vmem:[%s344 + $0x5c] sm:$0xf]
          %v427 = vld [vmem:[%s344 + $0x60] sm:$0xf]
          %v428 = vld [vmem:[%s344 + $0x64] sm:$0xf]
          %v429 = vld [vmem:[%s344 + $0x68] sm:$0xf]
          %v430 = vld [vmem:[%s344 + $0x6c] sm:$0xf]
          %v431 = vld [vmem:[%s344 + $0x70] sm:$0xf]
          %v432 = vld [vmem:[%s344 + $0x74] sm:$0xf]
          %v433 = vld [vmem:[%s344 + $0x78] sm:$0xf]
          %v434 = vld [vmem:[%s344 + $0x7c] sm:$0xf]
          %v435 = vld [vmem:[%s344 + $0x80] sm:$0xf]
          %v436 = vld [vmem:[%s344 + $0x84] sm:$0xf]
          %v437 = vld [vmem:[%s344 + $0x88] sm:$0xf]
          %v438 = vld [vmem:[%s344 + $0x8c] sm:$0xf]
          %v439 = vld [vmem:[%s344 + $0x90] sm:$0xf]
          %v440 = vld [vmem:[%s344 + $0x94] sm:$0xf]
          %v441 = vld [vmem:[%s344 + $0x98] sm:$0xf]
          %v442 = vld [vmem:[%s344 + $0x9c] sm:$0xf]
          %v443 = vld [vmem:[%s344 + $0xa0] sm:$0xf]
          %v444 = vld [vmem:[%s344 + $0xa4] sm:$0xf]
          %v445 = vld [vmem:[%s344 + $0xa8] sm:$0xf]
          %v446 = vld [vmem:[%s344 + $0xac] sm:$0xf]
          %v447 = vld [vmem:[%s344 + $0xb0] sm:$0xf]
          %v448 = vld [vmem:[%s344 + $0xb4] sm:$0xf]
          %v449 = vld [vmem:[%s344 + $0xb8] sm:$0xf]
          %v450 = vld [vmem:[%s344 + $0xbc] sm:$0xf]
          %v451 = vld [vmem:[%s344 + $0xc0] sm:$0xf]
          %v452 = vld [vmem:[%s344 + $0xc4] sm:$0xf]
          %v453 = vld [vmem:[%s344 + $0xc8] sm:$0xf]
          %v454 = vld [vmem:[%s344 + $0xcc] sm:$0xf]
          %v455 = vld [vmem:[%s344 + $0xd0] sm:$0xf]
          %v456 = vld [vmem:[%s344 + $0xd4] sm:$0xf]
          %v457 = vld [vmem:[%s344 + $0xd8] sm:$0xf]
          %v458 = vld [vmem:[%s344 + $0xdc] sm:$0xf]
          %v459 = vld [vmem:[%s344 + $0xe0] sm:$0xf]
          %v460 = vld [vmem:[%s344 + $0xe4] sm:$0xf]
          %v461 = vld [vmem:[%s344 + $0xe8] sm:$0xf]
          %v462 = vld [vmem:[%s344 + $0xec] sm:$0xf]
          %v463 = vld [vmem:[%s344 + $0xf0] sm:$0xf]
          %v464 = vld [vmem:[%s344 + $0xf4] sm:$0xf]
          %v465 = vld [vmem:[%s344 + $0xf8] sm:$0xf]
          %v466 = vld [vmem:[%s344 + $0xfc] sm:$0xf]
          %v467 = vld [vmem:[%s4] sm:$0xf]
          %v532 = vunpack.c.l.b16 %v403
          %v533 = vunpack.c.l.b16 %v404
          %v534 = vunpack.c.l.b16 %v405
          %v535 = vunpack.c.l.b16 %v406
          %v536 = vunpack.c.l.b16 %v407
          %v537 = vunpack.c.l.b16 %v408
          %v538 = vunpack.c.l.b16 %v409
          %v539 = vunpack.c.l.b16 %v410
          %v540 = vunpack.c.l.b16 %v411
          %v541 = vunpack.c.l.b16 %v412
          %v542 = vunpack.c.l.b16 %v413
          %v543 = vunpack.c.l.b16 %v414
          %v544 = vunpack.c.l.b16 %v415
          %v545 = vunpack.c.l.b16 %v416
          %v546 = vunpack.c.l.b16 %v417
          %v547 = vunpack.c.l.b16 %v418
          %v548 = vunpack.c.l.b16 %v419
          %v549 = vunpack.c.l.b16 %v420
          %v550 = vunpack.c.l.b16 %v421
          %v551 = vunpack.c.l.b16 %v422
          %v552 = vunpack.c.l.b16 %v423
          %v553 = vunpack.c.l.b16 %v424
          %v554 = vunpack.c.l.b16 %v425
          %v555 = vunpack.c.l.b16 %v426
          %v556 = vunpack.c.l.b16 %v427
          %v557 = vunpack.c.l.b16 %v428
          %v558 = vunpack.c.l.b16 %v429
          %v559 = vunpack.c.l.b16 %v430
          %v560 = vunpack.c.l.b16 %v431
          %v561 = vunpack.c.l.b16 %v432
          %v562 = vunpack.c.l.b16 %v433
          %v563 = vunpack.c.l.b16 %v434
          %v564 = vunpack.c.l.b16 %v435
          %v565 = vunpack.c.l.b16 %v436
          %v566 = vunpack.c.l.b16 %v437
          %v567 = vunpack.c.l.b16 %v438
          %v568 = vunpack.c.l.b16 %v439
          %v569 = vunpack.c.l.b16 %v440
          %v570 = vunpack.c.l.b16 %v441
          %v571 = vunpack.c.l.b16 %v442
          %v572 = vunpack.c.l.b16 %v443
          %v573 = vunpack.c.l.b16 %v444
          %v574 = vunpack.c.l.b16 %v445
          %v575 = vunpack.c.l.b16 %v446
          %v576 = vunpack.c.l.b16 %v447
          %v577 = vunpack.c.l.b16 %v448
          %v578 = vunpack.c.l.b16 %v449
          %v579 = vunpack.c.l.b16 %v450
          %v580 = vunpack.c.l.b16 %v451
          %v581 = vunpack.c.l.b16 %v452
          %v582 = vunpack.c.l.b16 %v453
          %v583 = vunpack.c.l.b16 %v454
          %v584 = vunpack.c.l.b16 %v455
          %v585 = vunpack.c.l.b16 %v456
          %v586 = vunpack.c.l.b16 %v457
          %v587 = vunpack.c.l.b16 %v458
          %v588 = vunpack.c.l.b16 %v459
          %v589 = vunpack.c.l.b16 %v460
          %v590 = vunpack.c.l.b16 %v461
          %v591 = vunpack.c.l.b16 %v462
          %v592 = vunpack.c.l.b16 %v463
          %v593 = vunpack.c.l.b16 %v464
          %v594 = vunpack.c.l.b16 %v465
          %v595 = vunpack.c.l.b16 %v466
          %v596 = vpack.c.b16 %v533, %v532
          %v597 = vpack.c.b16 %v535, %v534
          %v598 = vpack.c.b16 %v537, %v536
          %v599 = vpack.c.b16 %v539, %v538
          %v600 = vpack.c.b16 %v541, %v540
          %v601 = vpack.c.b16 %v543, %v542
          %v602 = vpack.c.b16 %v545, %v544
          %v603 = vpack.c.b16 %v547, %v546
          %v604 = vpack.c.b16 %v549, %v548
          %v605 = vpack.c.b16 %v551, %v550
          %v606 = vpack.c.b16 %v553, %v552
          %v607 = vpack.c.b16 %v555, %v554
          %v608 = vpack.c.b16 %v557, %v556
          %v609 = vpack.c.b16 %v559, %v558
          %v610 = vpack.c.b16 %v561, %v560
          %v611 = vpack.c.b16 %v563, %v562
          %v612 = vpack.c.b16 %v565, %v564
          %v613 = vpack.c.b16 %v567, %v566
          %v614 = vpack.c.b16 %v569, %v568
          %v615 = vpack.c.b16 %v571, %v570
          %v616 = vpack.c.b16 %v573, %v572
          %v617 = vpack.c.b16 %v575, %v574
          %v618 = vpack.c.b16 %v577, %v576
          %v619 = vpack.c.b16 %v579, %v578
          %v620 = vpack.c.b16 %v581, %v580
          %v621 = vpack.c.b16 %v583, %v582
          %v622 = vpack.c.b16 %v585, %v584
          %v623 = vpack.c.b16 %v587, %v586
          %v624 = vpack.c.b16 %v589, %v588
          %v625 = vpack.c.b16 %v591, %v590
          %v626 = vpack.c.b16 %v593, %v592
          %v627 = vpack.c.b16 %v595, %v594
          %vm628 = vcmask 64512
          %v630 = vsel %vm628, %v596, 0
          %v633 = vsel %vm628, %v597, 0
          %v636 = vsel %vm628, %v598, 0
          %v639 = vsel %vm628, %v599, 0
          %v642 = vsel %vm628, %v600, 0
          %v645 = vsel %vm628, %v601, 0
          %v648 = vsel %vm628, %v602, 0
          %v651 = vsel %vm628, %v603, 0
          %v654 = vsel %vm628, %v604, 0
          %v657 = vsel %vm628, %v605, 0
          %v660 = vsel %vm628, %v606, 0
          %v663 = vsel %vm628, %v607, 0
          %v666 = vsel %vm628, %v608, 0
          %v669 = vsel %vm628, %v609, 0
          %v672 = vsel %vm628, %v610, 0
          %v675 = vsel %vm628, %v611, 0
          %v678 = vsel %vm628, %v612, 0
          %v681 = vsel %vm628, %v613, 0
          %v684 = vsel %vm628, %v614, 0
          %v687 = vsel %vm628, %v615, 0
          %v690 = vsel %vm628, %v616, 0
          %v693 = vsel %vm628, %v617, 0
          %v696 = vsel %vm628, %v618, 0
          %v699 = vsel %vm628, %v619, 0
          %v702 = vsel %vm628, %v620, 0
          %v705 = vsel %vm628, %v621, 0
          %v708 = vsel %vm628, %v622, 0
          %v711 = vsel %vm628, %v623, 0
          %v714 = vsel %vm628, %v624, 0
          %v717 = vsel %vm628, %v625, 0
          %v720 = vsel %vm628, %v626, 0
          %v723 = vsel %vm628, %v627, 0
          %vm725 = vcmask 1043456
          %v727 = vsel %vm725, %v467, 0
          %729 = vmatprep.subr.bf16.mxu0 0
          %730 = vmatpush1.bf16.msra.mxu0 %v727
          %731 = vmatprep.subr.bf16.mxu0 0
          %732 = vmatpush1.bf16.msra.mxu0 0
          %733 = vmatprep.subr.bf16.mxu0 0
          %734 = vmatpush1.bf16.msra.mxu0 0
          %735 = vmatprep.subr.bf16.mxu0 0
          %736 = vmatpush1.bf16.msra.mxu0 0
          %737 = vmatprep.subr.bf16.mxu0 0
          %738 = vmatpush1.bf16.msra.mxu0 0
          %739 = vmatprep.subr.bf16.mxu0 0
          %740 = vmatpush1.bf16.msra.mxu0 0
          %741 = vmatprep.subr.bf16.mxu0 0
          %742 = vmatpush1.bf16.msra.mxu0 0
          %743 = vmatprep.subr.bf16.mxu0 0
          %744 = vmatpush1.bf16.msra.mxu0 0
          %745 = vmatprep.subr.bf16.mxu0 0
          %746 = vmatpush1.bf16.msra.mxu0 0
          %747 = vmatprep.subr.bf16.mxu0 0
          %748 = vmatpush1.bf16.msra.mxu0 0
          %749 = vmatprep.subr.bf16.mxu0 0
          %750 = vmatpush1.bf16.msra.mxu0 0
          %751 = vmatprep.subr.bf16.mxu0 0
          %752 = vmatpush1.bf16.msra.mxu0 0
          %753 = vmatprep.subr.bf16.mxu0 0
          %754 = vmatpush1.bf16.msra.mxu0 0
          %755 = vmatprep.subr.bf16.mxu0 0
          %756 = vmatpush1.bf16.msra.mxu0 0
          %757 = vmatprep.subr.bf16.mxu0 0
          %758 = vmatpush1.bf16.msra.mxu0 0
          %759 = vmatprep.subr.bf16.mxu0 0
          %760 = vmatpush1.bf16.msra.mxu0 0
          %761 = vmatprep.mubr.bf16.mxu0 0
          %762 = vmatmul.mubr.bf16.gmra.mrb[0].mxu0 %v630
          %v763 = vpop.f32.mrb[0].mxu0
          %v764 = vadd.f32 0.0, %v763
          %v765 = vpop.f32.mrb[0].mxu0
          %v766 = vpop.f32.mrb[0].mxu0
          %v767 = vadd.f32 0.0, %v766
          %v768 = vpop.f32.mrb[0].mxu0
          %769 = vmatprep.mubr.bf16.mxu0 0
          %770 = vmatmul.mubr.bf16.gmra.mrb[0].mxu0 %v633
          %v771 = vpop.f32.mrb[0].mxu0
          %v772 = vadd.f32 0.0, %v771
          %v773 = vpop.f32.mrb[0].mxu0
          %v774 = vpop.f32.mrb[0].mxu0
          %v775 = vadd.f32 0.0, %v774
          %v776 = vpop.f32.mrb[0].mxu0
          %777 = vmatprep.mubr.bf16.mxu0 0
          %778 = vmatmul.mubr.bf16.gmra.mrb[0].mxu0 %v636
          %v779 = vpop.f32.mrb[0].mxu0
          %v780 = vadd.f32 0.0, %v779
          %v781 = vpop.f32.mrb[0].mxu0
          %v782 = vpop.f32.mrb[0].mxu0
          %v783 = vadd.f32 0.0, %v782
          %v784 = vpop.f32.mrb[0].mxu0
          %785 = vmatprep.mubr.bf16.mxu0 0
          %786 = vmatmul.mubr.bf16.gmra.mrb[0].mxu0 %v639
          %v787 = vpop.f32.mrb[0].mxu0
          %v788 = vadd.f32 0.0, %v787
          %v789 = vpop.f32.mrb[0].mxu0
          %v790 = vpop.f32.mrb[0].mxu0
          %v791 = vadd.f32 0.0, %v790
          %v792 = vpop.f32.mrb[0].mxu0
          %793 = vmatprep.mubr.bf16.mxu0 0
          %794 = vmatmul.mubr.bf16.gmra.mrb[0].mxu0 %v642
          %v795 = vpop.f32.mrb[0].mxu0
          %v796 = vadd.f32 0.0, %v795
          %v797 = vpop.f32.mrb[0].mxu0
          %v798 = vpop.f32.mrb[0].mxu0
          %v799 = vadd.f32 0.0, %v798
          %v800 = vpop.f32.mrb[0].mxu0
          %801 = vmatprep.mubr.bf16.mxu0 0
          %802 = vmatmul.mubr.bf16.gmra.mrb[0].mxu0 %v645
          %v803 = vpop.f32.mrb[0].mxu0
          %v804 = vadd.f32 0.0, %v803
          %v805 = vpop.f32.mrb[0].mxu0
          %v806 = vpop.f32.mrb[0].mxu0
          %v807 = vadd.f32 0.0, %v806
          %v808 = vpop.f32.mrb[0].mxu0
          %809 = vmatprep.mubr.bf16.mxu0 0
          %810 = vmatmul.mubr.bf16.gmra.mrb[0].mxu0 %v648
          %v811 = vpop.f32.mrb[0].mxu0
          %v812 = vadd.f32 0.0, %v811
          %v813 = vpop.f32.mrb[0].mxu0
          %v814 = vpop.f32.mrb[0].mxu0
          %v815 = vadd.f32 0.0, %v814
          %v816 = vpop.f32.mrb[0].mxu0
          %817 = vmatprep.mubr.bf16.mxu0 0
          %818 = vmatmul.mubr.bf16.gmra.mrb[0].mxu0 %v651
          %v819 = vpop.f32.mrb[0].mxu0
          %v820 = vadd.f32 0.0, %v819
          %v821 = vpop.f32.mrb[0].mxu0
          %v822 = vpop.f32.mrb[0].mxu0
          %v823 = vadd.f32 0.0, %v822
          %v824 = vpop.f32.mrb[0].mxu0
          %825 = vmatprep.mubr.bf16.mxu0 0
          %826 = vmatmul.mubr.bf16.gmra.mrb[0].mxu0 %v654
          %v827 = vpop.f32.mrb[0].mxu0
          %v828 = vadd.f32 0.0, %v827
          %v829 = vpop.f32.mrb[0].mxu0
          %v830 = vpop.f32.mrb[0].mxu0
          %v831 = vadd.f32 0.0, %v830
          %v832 = vpop.f32.mrb[0].mxu0
          %833 = vmatprep.mubr.bf16.mxu0 0
          %834 = vmatmul.mubr.bf16.gmra.mrb[0].mxu0 %v657
          %v835 = vpop.f32.mrb[0].mxu0
          %v836 = vadd.f32 0.0, %v835
          %v837 = vpop.f32.mrb[0].mxu0
          %v838 = vpop.f32.mrb[0].mxu0
          %v839 = vadd.f32 0.0, %v838
          %v840 = vpop.f32.mrb[0].mxu0
          %841 = vmatprep.mubr.bf16.mxu0 0
          %842 = vmatmul.mubr.bf16.gmra.mrb[0].mxu0 %v660
          %v843 = vpop.f32.mrb[0].mxu0
          %v844 = vadd.f32 0.0, %v843
          %v845 = vpop.f32.mrb[0].mxu0
          %v846 = vpop.f32.mrb[0].mxu0
          %v847 = vadd.f32 0.0, %v846
          %v848 = vpop.f32.mrb[0].mxu0
          %849 = vmatprep.mubr.bf16.mxu0 0
          %850 = vmatmul.mubr.bf16.gmra.mrb[0].mxu0 %v663
          %v851 = vpop.f32.mrb[0].mxu0
          %v852 = vadd.f32 0.0, %v851
          %v853 = vpop.f32.mrb[0].mxu0
          %v854 = vpop.f32.mrb[0].mxu0
          %v855 = vadd.f32 0.0, %v854
          %v856 = vpop.f32.mrb[0].mxu0
          %857 = vmatprep.mubr.bf16.mxu0 0
          %858 = vmatmul.mubr.bf16.gmra.mrb[0].mxu0 %v666
          %v859 = vpop.f32.mrb[0].mxu0
          %v860 = vadd.f32 0.0, %v859
          %v861 = vpop.f32.mrb[0].mxu0
          %v862 = vpop.f32.mrb[0].mxu0
          %v863 = vadd.f32 0.0, %v862
          %v864 = vpop.f32.mrb[0].mxu0
          %865 = vmatprep.mubr.bf16.mxu0 0
          %866 = vmatmul.mubr.bf16.gmra.mrb[0].mxu0 %v669
          %v867 = vpop.f32.mrb[0].mxu0
          %v868 = vadd.f32 0.0, %v867
          %v869 = vpop.f32.mrb[0].mxu0
          %v870 = vpop.f32.mrb[0].mxu0
          %v871 = vadd.f32 0.0, %v870
          %v872 = vpop.f32.mrb[0].mxu0
          %873 = vmatprep.mubr.bf16.mxu0 0
          %874 = vmatmul.mubr.bf16.gmra.mrb[0].mxu0 %v672
          %v875 = vpop.f32.mrb[0].mxu0
          %v876 = vadd.f32 0.0, %v875
          %v877 = vpop.f32.mrb[0].mxu0
          %v878 = vpop.f32.mrb[0].mxu0
          %v879 = vadd.f32 0.0, %v878
          %v880 = vpop.f32.mrb[0].mxu0
          %881 = vmatprep.mubr.bf16.mxu0 0
          %882 = vmatmul.mubr.bf16.gmra.mrb[0].mxu0 %v675
          %v883 = vpop.f32.mrb[0].mxu0
          %v884 = vadd.f32 0.0, %v883
          %v885 = vpop.f32.mrb[0].mxu0
          %v886 = vpop.f32.mrb[0].mxu0
          %v887 = vadd.f32 0.0, %v886
          %v888 = vpop.f32.mrb[0].mxu0
          %889 = vmatprep.mubr.bf16.mxu0 0
          %890 = vmatmul.mubr.bf16.gmra.mrb[0].mxu0 %v678
          %v891 = vpop.f32.mrb[0].mxu0
          %v892 = vadd.f32 0.0, %v891
          %v893 = vpop.f32.mrb[0].mxu0
          %v894 = vpop.f32.mrb[0].mxu0
          %v895 = vadd.f32 0.0, %v894
          %v896 = vpop.f32.mrb[0].mxu0
          %897 = vmatprep.mubr.bf16.mxu0 0
          %898 = vmatmul.mubr.bf16.gmra.mrb[0].mxu0 %v681
          %v899 = vpop.f32.mrb[0].mxu0
          %v900 = vadd.f32 0.0, %v899
          %v901 = vpop.f32.mrb[0].mxu0
          %v902 = vpop.f32.mrb[0].mxu0
          %v903 = vadd.f32 0.0, %v902
          %v904 = vpop.f32.mrb[0].mxu0
          %905 = vmatprep.mubr.bf16.mxu0 0
          %906 = vmatmul.mubr.bf16.gmra.mrb[0].mxu0 %v684
          %v907 = vpop.f32.mrb[0].mxu0
          %v908 = vadd.f32 0.0, %v907
          %v909 = vpop.f32.mrb[0].mxu0
          %v910 = vpop.f32.mrb[0].mxu0
          %v911 = vadd.f32 0.0, %v910
          %v912 = vpop.f32.mrb[0].mxu0
          %913 = vmatprep.mubr.bf16.mxu0 0
          %914 = vmatmul.mubr.bf16.gmra.mrb[0].mxu0 %v687
          %v915 = vpop.f32.mrb[0].mxu0
          %v916 = vadd.f32 0.0, %v915
          %v917 = vpop.f32.mrb[0].mxu0
          %v918 = vpop.f32.mrb[0].mxu0
          %v919 = vadd.f32 0.0, %v918
          %v920 = vpop.f32.mrb[0].mxu0
          %921 = vmatprep.mubr.bf16.mxu0 0
          %922 = vmatmul.mubr.bf16.gmra.mrb[0].mxu0 %v690
          %v923 = vpop.f32.mrb[0].mxu0
          %v924 = vadd.f32 0.0, %v923
          %v925 = vpop.f32.mrb[0].mxu0
          %v926 = vpop.f32.mrb[0].mxu0
          %v927 = vadd.f32 0.0, %v926
          %v928 = vpop.f32.mrb[0].mxu0
          %929 = vmatprep.mubr.bf16.mxu0 0
          %930 = vmatmul.mubr.bf16.gmra.mrb[0].mxu0 %v693
          %v931 = vpop.f32.mrb[0].mxu0
          %v932 = vadd.f32 0.0, %v931
          %v933 = vpop.f32.mrb[0].mxu0
          %v934 = vpop.f32.mrb[0].mxu0
          %v935 = vadd.f32 0.0, %v934
          %v936 = vpop.f32.mrb[0].mxu0
          %937 = vmatprep.mubr.bf16.mxu0 0
          %938 = vmatmul.mubr.bf16.gmra.mrb[0].mxu0 %v696
          %v939 = vpop.f32.mrb[0].mxu0
          %v940 = vadd.f32 0.0, %v939
          %v941 = vpop.f32.mrb[0].mxu0
          %v942 = vpop.f32.mrb[0].mxu0
          %v943 = vadd.f32 0.0, %v942
          %v944 = vpop.f32.mrb[0].mxu0
          %945 = vmatprep.mubr.bf16.mxu0 0
          %946 = vmatmul.mubr.bf16.gmra.mrb[0].mxu0 %v699
          %v947 = vpop.f32.mrb[0].mxu0
          %v948 = vadd.f32 0.0, %v947
          %v949 = vpop.f32.mrb[0].mxu0
          %v950 = vpop.f32.mrb[0].mxu0
          %v951 = vadd.f32 0.0, %v950
          %v952 = vpop.f32.mrb[0].mxu0
          %953 = vmatprep.mubr.bf16.mxu0 0
          %954 = vmatmul.mubr.bf16.gmra.mrb[0].mxu0 %v702
          %v955 = vpop.f32.mrb[0].mxu0
          %v956 = vadd.f32 0.0, %v955
          %v957 = vpop.f32.mrb[0].mxu0
          %v958 = vpop.f32.mrb[0].mxu0
          %v959 = vadd.f32 0.0, %v958
          %v960 = vpop.f32.mrb[0].mxu0
          %961 = vmatprep.mubr.bf16.mxu0 0
          %962 = vmatmul.mubr.bf16.gmra.mrb[0].mxu0 %v705
          %v963 = vpop.f32.mrb[0].mxu0
          %v964 = vadd.f32 0.0, %v963
          %v965 = vpop.f32.mrb[0].mxu0
          %v966 = vpop.f32.mrb[0].mxu0
          %v967 = vadd.f32 0.0, %v966
          %v968 = vpop.f32.mrb[0].mxu0
          %969 = vmatprep.mubr.bf16.mxu0 0
          %970 = vmatmul.mubr.bf16.gmra.mrb[0].mxu0 %v708
          %v971 = vpop.f32.mrb[0].mxu0
          %v972 = vadd.f32 0.0, %v971
          %v973 = vpop.f32.mrb[0].mxu0
          %v974 = vpop.f32.mrb[0].mxu0
          %v975 = vadd.f32 0.0, %v974
          %v976 = vpop.f32.mrb[0].mxu0
          %977 = vmatprep.mubr.bf16.mxu0 0
          %978 = vmatmul.mubr.bf16.gmra.mrb[0].mxu0 %v711
          %v979 = vpop.f32.mrb[0].mxu0
          %v980 = vadd.f32 0.0, %v979
          %v981 = vpop.f32.mrb[0].mxu0
          %v982 = vpop.f32.mrb[0].mxu0
          %v983 = vadd.f32 0.0, %v982
          %v984 = vpop.f32.mrb[0].mxu0
          %985 = vmatprep.mubr.bf16.mxu0 0
          %986 = vmatmul.mubr.bf16.gmra.mrb[0].mxu0 %v714
          %v987 = vpop.f32.mrb[0].mxu0
          %v988 = vadd.f32 0.0, %v987
          %v989 = vpop.f32.mrb[0].mxu0
          %v990 = vpop.f32.mrb[0].mxu0
          %v991 = vadd.f32 0.0, %v990
          %v992 = vpop.f32.mrb[0].mxu0
          %993 = vmatprep.mubr.bf16.mxu0 0
          %994 = vmatmul.mubr.bf16.gmra.mrb[0].mxu0 %v717
          %v995 = vpop.f32.mrb[0].mxu0
          %v996 = vadd.f32 0.0, %v995
          %v997 = vpop.f32.mrb[0].mxu0
          %v998 = vpop.f32.mrb[0].mxu0
          %v999 = vadd.f32 0.0, %v998
          %v1000 = vpop.f32.mrb[0].mxu0
          %1001 = vmatprep.mubr.bf16.mxu0 0
          %1002 = vmatmul.mubr.bf16.gmra.mrb[0].mxu0 %v720
          %v1003 = vpop.f32.mrb[0].mxu0
          %v1004 = vadd.f32 0.0, %v1003
          %v1005 = vpop.f32.mrb[0].mxu0
          %v1006 = vpop.f32.mrb[0].mxu0
          %v1007 = vadd.f32 0.0, %v1006
          %v1008 = vpop.f32.mrb[0].mxu0
          %1009 = vmatprep.mubr.bf16.mxu0 0
          %1010 = vmatmul.mubr.bf16.gmra.mrb[0].mxu0 %v723
          %v1011 = vpop.f32.mrb[0].mxu0
          %v1012 = vadd.f32 0.0, %v1011
          %v1013 = vpop.f32.mrb[0].mxu0
          %v1014 = vpop.f32.mrb[0].mxu0
          %v1015 = vadd.f32 0.0, %v1014
          %v1016 = vpop.f32.mrb[0].mxu0
          %1017 = vdwg.mxu0
          %v1018 = vpack.c.bf16 %v767, %v764
          %v1019 = vpack.c.bf16 %v775, %v772
          %v1020 = vpack.c.bf16 %v783, %v780
          %v1021 = vpack.c.bf16 %v791, %v788
          %v1022 = vpack.c.bf16 %v799, %v796
          %v1023 = vpack.c.bf16 %v807, %v804
          %v1024 = vpack.c.bf16 %v815, %v812
          %v1025 = vpack.c.bf16 %v823, %v820
          %v1026 = vpack.c.bf16 %v831, %v828
          %v1027 = vpack.c.bf16 %v839, %v836
          %v1028 = vpack.c.bf16 %v847, %v844
          %v1029 = vpack.c.bf16 %v855, %v852
          %v1030 = vpack.c.bf16 %v863, %v860
          %v1031 = vpack.c.bf16 %v871, %v868
          %v1032 = vpack.c.bf16 %v879, %v876
          %v1033 = vpack.c.bf16 %v887, %v884
          %v1034 = vpack.c.bf16 %v895, %v892
          %v1035 = vpack.c.bf16 %v903, %v900
          %v1036 = vpack.c.bf16 %v911, %v908
          %v1037 = vpack.c.bf16 %v919, %v916
          %v1038 = vpack.c.bf16 %v927, %v924
          %v1039 = vpack.c.bf16 %v935, %v932
          %v1040 = vpack.c.bf16 %v943, %v940
          %v1041 = vpack.c.bf16 %v951, %v948
          %v1042 = vpack.c.bf16 %v959, %v956
          %v1043 = vpack.c.bf16 %v967, %v964
          %v1044 = vpack.c.bf16 %v975, %v972
          %v1045 = vpack.c.bf16 %v983, %v980
          %v1046 = vpack.c.bf16 %v991, %v988
          %v1047 = vpack.c.bf16 %v999, %v996
          %v1048 = vpack.c.bf16 %v1007, %v1004
          %v1049 = vpack.c.bf16 %v1015, %v1012
          %v1050 = vld [vmem:[#allocation2] sm:$0xff]
          %v1051 = vld [vmem:[#allocation2 + $0x8] sm:$0xff]
          %v1052 = vld [vmem:[#allocation2 + $0x10] sm:$0xff]
          %v1053 = vld [vmem:[#allocation2 + $0x18] sm:$0xff]
          %v1054 = vld [vmem:[#allocation2 + $0x20] sm:$0xff]
          %v1055 = vld [vmem:[#allocation2 + $0x28] sm:$0xff]
          %v1056 = vld [vmem:[#allocation2 + $0x30] sm:$0xff]
          %v1057 = vld [vmem:[#allocation2 + $0x38] sm:$0xff]
          %v1058 = vld [vmem:[#allocation2 + $0x40] sm:$0xff]
          %v1059 = vld [vmem:[#allocation2 + $0x48] sm:$0xff]
          %v1060 = vld [vmem:[#allocation2 + $0x50] sm:$0xff]
          %v1061 = vld [vmem:[#allocation2 + $0x58] sm:$0xff]
          %v1062 = vld [vmem:[#allocation2 + $0x60] sm:$0xff]
          %v1063 = vld [vmem:[#allocation2 + $0x68] sm:$0xff]
          %v1064 = vld [vmem:[#allocation2 + $0x70] sm:$0xff]
          %v1065 = vld [vmem:[#allocation2 + $0x78] sm:$0xff]
          %v1066 = vld [vmem:[#allocation2 + $0x80] sm:$0xff]
          %v1067 = vld [vmem:[#allocation2 + $0x88] sm:$0xff]
          %v1068 = vld [vmem:[#allocation2 + $0x90] sm:$0xff]
          %v1069 = vld [vmem:[#allocation2 + $0x98] sm:$0xff]
          %v1070 = vld [vmem:[#allocation2 + $0xa0] sm:$0xff]
          %v1071 = vld [vmem:[#allocation2 + $0xa8] sm:$0xff]
          %v1072 = vld [vmem:[#allocation2 + $0xb0] sm:$0xff]
          %v1073 = vld [vmem:[#allocation2 + $0xb8] sm:$0xff]
          %v1074 = vld [vmem:[#allocation2 + $0xc0] sm:$0xff]
          %v1075 = vld [vmem:[#allocation2 + $0xc8] sm:$0xff]
          %v1076 = vld [vmem:[#allocation2 + $0xd0] sm:$0xff]
          %v1077 = vld [vmem:[#allocation2 + $0xd8] sm:$0xff]
          %v1078 = vld [vmem:[#allocation2 + $0xe0] sm:$0xff]
          %v1079 = vld [vmem:[#allocation2 + $0xe8] sm:$0xff]
          %v1080 = vld [vmem:[#allocation2 + $0xf0] sm:$0xff]
          %v1081 = vld [vmem:[#allocation2 + $0xf8] sm:$0xff]
          %v1082 = vld [vmem:[%s284] sm:$0xff]
          %v1083 = vld [vmem:[%s284 + $0x8] sm:$0xff]
          %v1084 = vld [vmem:[%s284 + $0x10] sm:$0xff]
          %v1085 = vld [vmem:[%s284 + $0x18] sm:$0xff]
          %v1086 = vld [vmem:[%s284 + $0x20] sm:$0xff]
          %v1087 = vld [vmem:[%s284 + $0x28] sm:$0xff]
          %v1088 = vld [vmem:[%s284 + $0x30] sm:$0xff]
          %v1089 = vld [vmem:[%s284 + $0x38] sm:$0xff]
          %v1090 = vld [vmem:[%s284 + $0x40] sm:$0xff]
          %v1091 = vld [vmem:[%s284 + $0x48] sm:$0xff]
          %v1092 = vld [vmem:[%s284 + $0x50] sm:$0xff]
          %v1093 = vld [vmem:[%s284 + $0x58] sm:$0xff]
          %v1094 = vld [vmem:[%s284 + $0x60] sm:$0xff]
          %v1095 = vld [vmem:[%s284 + $0x68] sm:$0xff]
          %v1096 = vld [vmem:[%s284 + $0x70] sm:$0xff]
          %v1097 = vld [vmem:[%s284 + $0x78] sm:$0xff]
          %v1098 = vld [vmem:[%s284 + $0x80] sm:$0xff]
          %v1099 = vld [vmem:[%s284 + $0x88] sm:$0xff]
          %v1100 = vld [vmem:[%s284 + $0x90] sm:$0xff]
          %v1101 = vld [vmem:[%s284 + $0x98] sm:$0xff]
          %v1102 = vld [vmem:[%s284 + $0xa0] sm:$0xff]
          %v1103 = vld [vmem:[%s284 + $0xa8] sm:$0xff]
          %v1104 = vld [vmem:[%s284 + $0xb0] sm:$0xff]
          %v1105 = vld [vmem:[%s284 + $0xb8] sm:$0xff]
          %v1106 = vld [vmem:[%s284 + $0xc0] sm:$0xff]
          %v1107 = vld [vmem:[%s284 + $0xc8] sm:$0xff]
          %v1108 = vld [vmem:[%s284 + $0xd0] sm:$0xff]
          %v1109 = vld [vmem:[%s284 + $0xd8] sm:$0xff]
          %v1110 = vld [vmem:[%s284 + $0xe0] sm:$0xff]
          %v1111 = vld [vmem:[%s284 + $0xe8] sm:$0xff]
          %v1112 = vld [vmem:[%s284 + $0xf0] sm:$0xff]
          %v1113 = vld [vmem:[%s284 + $0xf8] sm:$0xff]
          %v1114 = vld [vmem:[%s284 + $0x100] sm:$0xff]
          %v1115 = vld [vmem:[%s284 + $0x108] sm:$0xff]
          %v1116 = vld [vmem:[%s284 + $0x110] sm:$0xff]
          %v1117 = vld [vmem:[%s284 + $0x118] sm:$0xff]
          %v1118 = vld [vmem:[%s284 + $0x120] sm:$0xff]
          %v1119 = vld [vmem:[%s284 + $0x128] sm:$0xff]
          %v1120 = vld [vmem:[%s284 + $0x130] sm:$0xff]
          %v1121 = vld [vmem:[%s284 + $0x138] sm:$0xff]
          %v1122 = vld [vmem:[%s284 + $0x140] sm:$0xff]
          %v1123 = vld [vmem:[%s284 + $0x148] sm:$0xff]
          %v1124 = vld [vmem:[%s284 + $0x150] sm:$0xff]
          %v1125 = vld [vmem:[%s284 + $0x158] sm:$0xff]
          %v1126 = vld [vmem:[%s284 + $0x160] sm:$0xff]
          %v1127 = vld [vmem:[%s284 + $0x168] sm:$0xff]
          %v1128 = vld [vmem:[%s284 + $0x170] sm:$0xff]
          %v1129 = vld [vmem:[%s284 + $0x178] sm:$0xff]
          %v1130 = vld [vmem:[%s284 + $0x180] sm:$0xff]
          %v1131 = vld [vmem:[%s284 + $0x188] sm:$0xff]
          %v1132 = vld [vmem:[%s284 + $0x190] sm:$0xff]
          %v1133 = vld [vmem:[%s284 + $0x198] sm:$0xff]
          %v1134 = vld [vmem:[%s284 + $0x1a0] sm:$0xff]
          %v1135 = vld [vmem:[%s284 + $0x1a8] sm:$0xff]
          %v1136 = vld [vmem:[%s284 + $0x1b0] sm:$0xff]
          %v1137 = vld [vmem:[%s284 + $0x1b8] sm:$0xff]
          %v1138 = vld [vmem:[%s284 + $0x1c0] sm:$0xff]
          %v1139 = vld [vmem:[%s284 + $0x1c8] sm:$0xff]
          %v1140 = vld [vmem:[%s284 + $0x1d0] sm:$0xff]
          %v1141 = vld [vmem:[%s284 + $0x1d8] sm:$0xff]
          %v1142 = vld [vmem:[%s284 + $0x1e0] sm:$0xff]
          %v1143 = vld [vmem:[%s284 + $0x1e8] sm:$0xff]
          %v1144 = vld [vmem:[%s284 + $0x1f0] sm:$0xff]
          %v1145 = vld [vmem:[%s284 + $0x1f8] sm:$0xff]
          %v1210 = vunpack.c.l.b16 %v1082
          %v1211 = vunpack.c.h.b16 %v1082
          %v1212 = vunpack.c.l.b16 %v1083
          %v1213 = vunpack.c.h.b16 %v1083
          %v1214 = vunpack.c.l.b16 %v1084
          %v1215 = vunpack.c.h.b16 %v1084
          %v1216 = vunpack.c.l.b16 %v1085
          %v1217 = vunpack.c.h.b16 %v1085
          %v1218 = vunpack.c.l.b16 %v1086
          %v1219 = vunpack.c.h.b16 %v1086
          %v1220 = vunpack.c.l.b16 %v1087
          %v1221 = vunpack.c.h.b16 %v1087
          %v1222 = vunpack.c.l.b16 %v1088
          %v1223 = vunpack.c.h.b16 %v1088
          %v1224 = vunpack.c.l.b16 %v1089
          %v1225 = vunpack.c.h.b16 %v1089
          %v1226 = vunpack.c.l.b16 %v1090
          %v1227 = vunpack.c.h.b16 %v1090
          %v1228 = vunpack.c.l.b16 %v1091
          %v1229 = vunpack.c.h.b16 %v1091
          %v1230 = vunpack.c.l.b16 %v1092
          %v1231 = vunpack.c.h.b16 %v1092
          %v1232 = vunpack.c.l.b16 %v1093
          %v1233 = vunpack.c.h.b16 %v1093
          %v1234 = vunpack.c.l.b16 %v1094
          %v1235 = vunpack.c.h.b16 %v1094
          %v1236 = vunpack.c.l.b16 %v1095
          %v1237 = vunpack.c.h.b16 %v1095
          %v1238 = vunpack.c.l.b16 %v1096
          %v1239 = vunpack.c.h.b16 %v1096
          %v1240 = vunpack.c.l.b16 %v1097
          %v1241 = vunpack.c.h.b16 %v1097
          %v1242 = vunpack.c.l.b16 %v1098
          %v1243 = vunpack.c.h.b16 %v1098
          %v1244 = vunpack.c.l.b16 %v1099
          %v1245 = vunpack.c.h.b16 %v1099
          %v1246 = vunpack.c.l.b16 %v1100
          %v1247 = vunpack.c.h.b16 %v1100
          %v1248 = vunpack.c.l.b16 %v1101
          %v1249 = vunpack.c.h.b16 %v1101
          %v1250 = vunpack.c.l.b16 %v1102
          %v1251 = vunpack.c.h.b16 %v1102
          %v1252 = vunpack.c.l.b16 %v1103
          %v1253 = vunpack.c.h.b16 %v1103
          %v1254 = vunpack.c.l.b16 %v1104
          %v1255 = vunpack.c.h.b16 %v1104
          %v1256 = vunpack.c.l.b16 %v1105
          %v1257 = vunpack.c.h.b16 %v1105
          %v1258 = vunpack.c.l.b16 %v1106
          %v1259 = vunpack.c.h.b16 %v1106
          %v1260 = vunpack.c.l.b16 %v1107
          %v1261 = vunpack.c.h.b16 %v1107
          %v1262 = vunpack.c.l.b16 %v1108
          %v1263 = vunpack.c.h.b16 %v1108
          %v1264 = vunpack.c.l.b16 %v1109
          %v1265 = vunpack.c.h.b16 %v1109
          %v1266 = vunpack.c.l.b16 %v1110
          %v1267 = vunpack.c.h.b16 %v1110
          %v1268 = vunpack.c.l.b16 %v1111
          %v1269 = vunpack.c.h.b16 %v1111
          %v1270 = vunpack.c.l.b16 %v1112
          %v1271 = vunpack.c.h.b16 %v1112
          %v1272 = vunpack.c.l.b16 %v1113
          %v1273 = vunpack.c.h.b16 %v1113
          %v1274 = vunpack.c.l.b16 %v1114
          %v1275 = vunpack.c.h.b16 %v1114
          %v1276 = vunpack.c.l.b16 %v1115
          %v1277 = vunpack.c.h.b16 %v1115
          %v1278 = vunpack.c.l.b16 %v1116
          %v1279 = vunpack.c.h.b16 %v1116
          %v1280 = vunpack.c.l.b16 %v1117
          %v1281 = vunpack.c.h.b16 %v1117
          %v1282 = vunpack.c.l.b16 %v1118
          %v1283 = vunpack.c.h.b16 %v1118
          %v1284 = vunpack.c.l.b16 %v1119
          %v1285 = vunpack.c.h.b16 %v1119
          %v1286 = vunpack.c.l.b16 %v1120
          %v1287 = vunpack.c.h.b16 %v1120
          %v1288 = vunpack.c.l.b16 %v1121
          %v1289 = vunpack.c.h.b16 %v1121
          %v1290 = vunpack.c.l.b16 %v1122
          %v1291 = vunpack.c.h.b16 %v1122
          %v1292 = vunpack.c.l.b16 %v1123
          %v1293 = vunpack.c.h.b16 %v1123
          %v1294 = vunpack.c.l.b16 %v1124
          %v1295 = vunpack.c.h.b16 %v1124
          %v1296 = vunpack.c.l.b16 %v1125
          %v1297 = vunpack.c.h.b16 %v1125
          %v1298 = vunpack.c.l.b16 %v1126
          %v1299 = vunpack.c.h.b16 %v1126
          %v1300 = vunpack.c.l.b16 %v1127
          %v1301 = vunpack.c.h.b16 %v1127
          %v1302 = vunpack.c.l.b16 %v1128
          %v1303 = vunpack.c.h.b16 %v1128
          %v1304 = vunpack.c.l.b16 %v1129
          %v1305 = vunpack.c.h.b16 %v1129
          %v1306 = vunpack.c.l.b16 %v1130
          %v1307 = vunpack.c.h.b16 %v1130
          %v1308 = vunpack.c.l.b16 %v1131
          %v1309 = vunpack.c.h.b16 %v1131
          %v1310 = vunpack.c.l.b16 %v1132
          %v1311 = vunpack.c.h.b16 %v1132
          %v1312 = vunpack.c.l.b16 %v1133
          %v1313 = vunpack.c.h.b16 %v1133
          %v1314 = vunpack.c.l.b16 %v1134
          %v1315 = vunpack.c.h.b16 %v1134
          %v1316 = vunpack.c.l.b16 %v1135
          %v1317 = vunpack.c.h.b16 %v1135
          %v1318 = vunpack.c.l.b16 %v1136
          %v1319 = vunpack.c.h.b16 %v1136
          %v1320 = vunpack.c.l.b16 %v1137
          %v1321 = vunpack.c.h.b16 %v1137
          %v1322 = vunpack.c.l.b16 %v1138
          %v1323 = vunpack.c.h.b16 %v1138
          %v1324 = vunpack.c.l.b16 %v1139
          %v1325 = vunpack.c.h.b16 %v1139
          %v1326 = vunpack.c.l.b16 %v1140
          %v1327 = vunpack.c.h.b16 %v1140
          %v1328 = vunpack.c.l.b16 %v1141
          %v1329 = vunpack.c.h.b16 %v1141
          %v1330 = vunpack.c.l.b16 %v1142
          %v1331 = vunpack.c.h.b16 %v1142
          %v1332 = vunpack.c.l.b16 %v1143
          %v1333 = vunpack.c.h.b16 %v1143
          %v1334 = vunpack.c.l.b16 %v1144
          %v1335 = vunpack.c.h.b16 %v1144
          %v1336 = vunpack.c.l.b16 %v1145
          %v1337 = vunpack.c.h.b16 %v1145
          %v1338 = vpack.c.b16 %v1214, %v1210
          %v1339 = vpack.c.b16 %v1215, %v1211
          %v1340 = vpack.c.b16 %v1216, %v1212
          %v1341 = vpack.c.b16 %v1217, %v1213
          %v1342 = vpack.c.b16 %v1222, %v1218
          %v1343 = vpack.c.b16 %v1223, %v1219
          %v1344 = vpack.c.b16 %v1224, %v1220
          %v1345 = vpack.c.b16 %v1225, %v1221
          %v1346 = vpack.c.b16 %v1230, %v1226
          %v1347 = vpack.c.b16 %v1231, %v1227
          %v1348 = vpack.c.b16 %v1232, %v1228
          %v1349 = vpack.c.b16 %v1233, %v1229
          %v1350 = vpack.c.b16 %v1238, %v1234
          %v1351 = vpack.c.b16 %v1239, %v1235
          %v1352 = vpack.c.b16 %v1240, %v1236
          %v1353 = vpack.c.b16 %v1241, %v1237
          %v1354 = vpack.c.b16 %v1246, %v1242
          %v1355 = vpack.c.b16 %v1247, %v1243
          %v1356 = vpack.c.b16 %v1248, %v1244
          %v1357 = vpack.c.b16 %v1249, %v1245
          %v1358 = vpack.c.b16 %v1254, %v1250
          %v1359 = vpack.c.b16 %v1255, %v1251
          %v1360 = vpack.c.b16 %v1256, %v1252
          %v1361 = vpack.c.b16 %v1257, %v1253
          %v1362 = vpack.c.b16 %v1262, %v1258
          %v1363 = vpack.c.b16 %v1263, %v1259
          %v1364 = vpack.c.b16 %v1264, %v1260
          %v1365 = vpack.c.b16 %v1265, %v1261
          %v1366 = vpack.c.b16 %v1270, %v1266
          %v1367 = vpack.c.b16 %v1271, %v1267
          %v1368 = vpack.c.b16 %v1272, %v1268
          %v1369 = vpack.c.b16 %v1273, %v1269
          %v1370 = vpack.c.b16 %v1278, %v1274
          %v1371 = vpack.c.b16 %v1279, %v1275
          %v1372 = vpack.c.b16 %v1280, %v1276
          %v1373 = vpack.c.b16 %v1281, %v1277
          %v1374 = vpack.c.b16 %v1286, %v1282
          %v1375 = vpack.c.b16 %v1287, %v1283
          %v1376 = vpack.c.b16 %v1288, %v1284
          %v1377 = vpack.c.b16 %v1289, %v1285
          %v1378 = vpack.c.b16 %v1294, %v1290
          %v1379 = vpack.c.b16 %v1295, %v1291
          %v1380 = vpack.c.b16 %v1296, %v1292
          %v1381 = vpack.c.b16 %v1297, %v1293
          %v1382 = vpack.c.b16 %v1302, %v1298
          %v1383 = vpack.c.b16 %v1303, %v1299
          %v1384 = vpack.c.b16 %v1304, %v1300
          %v1385 = vpack.c.b16 %v1305, %v1301
          %v1386 = vpack.c.b16 %v1310, %v1306
          %v1387 = vpack.c.b16 %v1311, %v1307
          %v1388 = vpack.c.b16 %v1312, %v1308
          %v1389 = vpack.c.b16 %v1313, %v1309
          %v1390 = vpack.c.b16 %v1318, %v1314
          %v1391 = vpack.c.b16 %v1319, %v1315
          %v1392 = vpack.c.b16 %v1320, %v1316
          %v1393 = vpack.c.b16 %v1321, %v1317
          %v1394 = vpack.c.b16 %v1326, %v1322
          %v1395 = vpack.c.b16 %v1327, %v1323
          %v1396 = vpack.c.b16 %v1328, %v1324
          %v1397 = vpack.c.b16 %v1329, %v1325
          %v1398 = vpack.c.b16 %v1334, %v1330
          %v1399 = vpack.c.b16 %v1335, %v1331
          %v1400 = vpack.c.b16 %v1336, %v1332
          %v1401 = vpack.c.b16 %v1337, %v1333
          %1466 = vmatprep.subr.bf16.mxu0 0
          %1467 = vmatpush1.bf16.msra.mxu0 %v1018
          %1468 = vmatprep.subr.bf16.mxu0 0
          %1469 = vmatpush1.bf16.msra.mxu0 %v1019
          %1470 = vmatprep.subr.bf16.mxu0 0
          %1471 = vmatpush1.bf16.msra.mxu0 %v1020
          %1472 = vmatprep.subr.bf16.mxu0 0
          %1473 = vmatpush1.bf16.msra.mxu0 %v1021
          %1474 = vmatprep.subr.bf16.mxu0 0
          %1475 = vmatpush1.bf16.msra.mxu0 %v1022
          %1476 = vmatprep.subr.bf16.mxu0 0
          %1477 = vmatpush1.bf16.msra.mxu0 %v1023
          %1478 = vmatprep.subr.bf16.mxu0 0
          %1479 = vmatpush1.bf16.msra.mxu0 %v1024
          %1480 = vmatprep.subr.bf16.mxu0 0
          %1481 = vmatpush1.bf16.msra.mxu0 %v1025
          %1482 = vmatprep.subr.bf16.mxu0 0
          %1483 = vmatpush1.bf16.msra.mxu0 %v1026
          %1484 = vmatprep.subr.bf16.mxu0 0
          %1485 = vmatpush1.bf16.msra.mxu0 %v1027
          %1486 = vmatprep.subr.bf16.mxu0 0
          %1487 = vmatpush1.bf16.msra.mxu0 %v1028
          %1488 = vmatprep.subr.bf16.mxu0 0
          %1489 = vmatpush1.bf16.msra.mxu0 %v1029
          %1490 = vmatprep.subr.bf16.mxu0 0
          %1491 = vmatpush1.bf16.msra.mxu0 %v1030
          %1492 = vmatprep.subr.bf16.mxu0 0
          %1493 = vmatpush1.bf16.msra.mxu0 %v1031
          %1494 = vmatprep.subr.bf16.mxu0 0
          %1495 = vmatpush1.bf16.msra.mxu0 %v1032
          %1496 = vmatprep.subr.bf16.mxu0 0
          %1497 = vmatpush1.bf16.msra.mxu0 %v1033
          %1498 = vmatprep.mubr.bf16.mxu0 %v1339
          %1499 = vmatmul.mubr.bf16.gmra.mrb[0].mxu0 %v1338
          %v1500 = vpop.f32.mrb[0].mxu0
          %v1501 = vadd.f32 0.0, %v1500
          %v1502 = vpop.f32.mrb[0].mxu0
          %v1503 = vpop.f32.mrb[0].mxu0
          %v1504 = vadd.f32 0.0, %v1503
          %v1505 = vpop.f32.mrb[0].mxu0
          %1506 = vmatprep.mubr.bf16.mxu0 %v1343
          %1507 = vmatmul.mubr.bf16.gmra.mrb[0].mxu0 %v1342
          %v1508 = vpop.f32.mrb[0].mxu0
          %v1509 = vadd.f32 0.0, %v1508
          %v1510 = vpop.f32.mrb[0].mxu0
          %v1511 = vpop.f32.mrb[0].mxu0
          %v1512 = vadd.f32 0.0, %v1511
          %v1513 = vpop.f32.mrb[0].mxu0
          %1514 = vmatprep.mubr.bf16.mxu0 %v1347
          %1515 = vmatmul.mubr.bf16.gmra.mrb[0].mxu0 %v1346
          %v1516 = vpop.f32.mrb[0].mxu0
          %v1517 = vadd.f32 0.0, %v1516
          %v1518 = vpop.f32.mrb[0].mxu0
          %v1519 = vpop.f32.mrb[0].mxu0
          %v1520 = vadd.f32 0.0, %v1519
          %v1521 = vpop.f32.mrb[0].mxu0
          %1522 = vmatprep.mubr.bf16.mxu0 %v1351
          %1523 = vmatmul.mubr.bf16.gmra.mrb[0].mxu0 %v1350
          %v1524 = vpop.f32.mrb[0].mxu0
          %v1525 = vadd.f32 0.0, %v1524
          %v1526 = vpop.f32.mrb[0].mxu0
          %v1527 = vpop.f32.mrb[0].mxu0
          %v1528 = vadd.f32 0.0, %v1527
          %v1529 = vpop.f32.mrb[0].mxu0
          %1530 = vmatprep.mubr.bf16.mxu0 %v1355
          %1531 = vmatmul.mubr.bf16.gmra.mrb[0].mxu0 %v1354
          %v1532 = vpop.f32.mrb[0].mxu0
          %v1533 = vadd.f32 0.0, %v1532
          %v1534 = vpop.f32.mrb[0].mxu0
          %v1535 = vpop.f32.mrb[0].mxu0
          %v1536 = vadd.f32 0.0, %v1535
          %v1537 = vpop.f32.mrb[0].mxu0
          %1538 = vmatprep.mubr.bf16.mxu0 %v1359
          %1539 = vmatmul.mubr.bf16.gmra.mrb[0].mxu0 %v1358
          %v1540 = vpop.f32.mrb[0].mxu0
          %v1541 = vadd.f32 0.0, %v1540
          %v1542 = vpop.f32.mrb[0].mxu0
          %v1543 = vpop.f32.mrb[0].mxu0
          %v1544 = vadd.f32 0.0, %v1543
          %v1545 = vpop.f32.mrb[0].mxu0
          %1546 = vmatprep.mubr.bf16.mxu0 %v1363
          %1547 = vmatmul.mubr.bf16.gmra.mrb[0].mxu0 %v1362
          %v1548 = vpop.f32.mrb[0].mxu0
          %v1549 = vadd.f32 0.0, %v1548
          %v1550 = vpop.f32.mrb[0].mxu0
          %v1551 = vpop.f32.mrb[0].mxu0
          %v1552 = vadd.f32 0.0, %v1551
          %v1553 = vpop.f32.mrb[0].mxu0
          %1554 = vmatprep.mubr.bf16.mxu0 %v1367
          %1555 = vmatmul.mubr.bf16.gmra.mrb[0].mxu0 %v1366
          %v1556 = vpop.f32.mrb[0].mxu0
          %v1557 = vadd.f32 0.0, %v1556
          %v1558 = vpop.f32.mrb[0].mxu0
          %v1559 = vpop.f32.mrb[0].mxu0
          %v1560 = vadd.f32 0.0, %v1559
          %v1561 = vpop.f32.mrb[0].mxu0
          %1562 = vmatprep.mubr.bf16.mxu0 %v1371
          %1563 = vmatmul.mubr.bf16.gmra.mrb[0].mxu0 %v1370
          %v1564 = vpop.f32.mrb[0].mxu0
          %v1565 = vadd.f32 0.0, %v1564
          %v1566 = vpop.f32.mrb[0].mxu0
          %v1567 = vpop.f32.mrb[0].mxu0
          %v1568 = vadd.f32 0.0, %v1567
          %v1569 = vpop.f32.mrb[0].mxu0
          %1570 = vmatprep.mubr.bf16.mxu0 %v1375
          %1571 = vmatmul.mubr.bf16.gmra.mrb[0].mxu0 %v1374
          %v1572 = vpop.f32.mrb[0].mxu0
          %v1573 = vadd.f32 0.0, %v1572
          %v1574 = vpop.f32.mrb[0].mxu0
          %v1575 = vpop.f32.mrb[0].mxu0
          %v1576 = vadd.f32 0.0, %v1575
          %v1577 = vpop.f32.mrb[0].mxu0
          %1578 = vmatprep.mubr.bf16.mxu0 %v1379
          %1579 = vmatmul.mubr.bf16.gmra.mrb[0].mxu0 %v1378
          %v1580 = vpop.f32.mrb[0].mxu0
          %v1581 = vadd.f32 0.0, %v1580
          %v1582 = vpop.f32.mrb[0].mxu0
          %v1583 = vpop.f32.mrb[0].mxu0
          %v1584 = vadd.f32 0.0, %v1583
          %v1585 = vpop.f32.mrb[0].mxu0
          %1586 = vmatprep.mubr.bf16.mxu0 %v1383
          %1587 = vmatmul.mubr.bf16.gmra.mrb[0].mxu0 %v1382
          %v1588 = vpop.f32.mrb[0].mxu0
          %v1589 = vadd.f32 0.0, %v1588
          %v1590 = vpop.f32.mrb[0].mxu0
          %v1591 = vpop.f32.mrb[0].mxu0
          %v1592 = vadd.f32 0.0, %v1591
          %v1593 = vpop.f32.mrb[0].mxu0
          %1594 = vmatprep.mubr.bf16.mxu0 %v1387
          %1595 = vmatmul.mubr.bf16.gmra.mrb[0].mxu0 %v1386
          %v1596 = vpop.f32.mrb[0].mxu0
          %v1597 = vadd.f32 0.0, %v1596
          %v1598 = vpop.f32.mrb[0].mxu0
          %v1599 = vpop.f32.mrb[0].mxu0
          %v1600 = vadd.f32 0.0, %v1599
          %v1601 = vpop.f32.mrb[0].mxu0
          %1602 = vmatprep.mubr.bf16.mxu0 %v1391
          %1603 = vmatmul.mubr.bf16.gmra.mrb[0].mxu0 %v1390
          %v1604 = vpop.f32.mrb[0].mxu0
          %v1605 = vadd.f32 0.0, %v1604
          %v1606 = vpop.f32.mrb[0].mxu0
          %v1607 = vpop.f32.mrb[0].mxu0
          %v1608 = vadd.f32 0.0, %v1607
          %v1609 = vpop.f32.mrb[0].mxu0
          %1610 = vmatprep.mubr.bf16.mxu0 %v1395
          %1611 = vmatmul.mubr.bf16.gmra.mrb[0].mxu0 %v1394
          %v1612 = vpop.f32.mrb[0].mxu0
          %v1613 = vadd.f32 0.0, %v1612
          %v1614 = vpop.f32.mrb[0].mxu0
          %v1615 = vpop.f32.mrb[0].mxu0
          %v1616 = vadd.f32 0.0, %v1615
          %v1617 = vpop.f32.mrb[0].mxu0
          %1618 = vmatprep.mubr.bf16.mxu0 %v1399
          %1619 = vmatmul.mubr.bf16.gmra.mrb[0].mxu0 %v1398
          %v1620 = vpop.f32.mrb[0].mxu0
          %v1621 = vadd.f32 0.0, %v1620
          %v1622 = vpop.f32.mrb[0].mxu0
          %v1623 = vpop.f32.mrb[0].mxu0
          %v1624 = vadd.f32 0.0, %v1623
          %v1625 = vpop.f32.mrb[0].mxu0
          %1626 = vdwg.mxu0
          %1627 = vmatprep.subr.bf16.mxu0 0
          %1628 = vmatpush1.bf16.msra.mxu0 %v1034
          %1629 = vmatprep.subr.bf16.mxu0 0
          %1630 = vmatpush1.bf16.msra.mxu0 %v1035
          %1631 = vmatprep.subr.bf16.mxu0 0
          %1632 = vmatpush1.bf16.msra.mxu0 %v1036
          %1633 = vmatprep.subr.bf16.mxu0 0
          %1634 = vmatpush1.bf16.msra.mxu0 %v1037
          %1635 = vmatprep.subr.bf16.mxu0 0
          %1636 = vmatpush1.bf16.msra.mxu0 %v1038
          %1637 = vmatprep.subr.bf16.mxu0 0
          %1638 = vmatpush1.bf16.msra.mxu0 %v1039
          %1639 = vmatprep.subr.bf16.mxu0 0
          %1640 = vmatpush1.bf16.msra.mxu0 %v1040
          %1641 = vmatprep.subr.bf16.mxu0 0
          %1642 = vmatpush1.bf16.msra.mxu0 %v1041
          %1643 = vmatprep.subr.bf16.mxu0 0
          %1644 = vmatpush1.bf16.msra.mxu0 %v1042
          %1645 = vmatprep.subr.bf16.mxu0 0
          %1646 = vmatpush1.bf16.msra.mxu0 %v1043
          %1647 = vmatprep.subr.bf16.mxu0 0
          %1648 = vmatpush1.bf16.msra.mxu0 %v1044
          %1649 = vmatprep.subr.bf16.mxu0 0
          %1650 = vmatpush1.bf16.msra.mxu0 %v1045
          %1651 = vmatprep.subr.bf16.mxu0 0
          %1652 = vmatpush1.bf16.msra.mxu0 %v1046
          %1653 = vmatprep.subr.bf16.mxu0 0
          %1654 = vmatpush1.bf16.msra.mxu0 %v1047
          %1655 = vmatprep.subr.bf16.mxu0 0
          %1656 = vmatpush1.bf16.msra.mxu0 %v1048
          %1657 = vmatprep.subr.bf16.mxu0 0
          %1658 = vmatpush1.bf16.msra.mxu0 %v1049
          %1659 = vmatprep.mubr.bf16.mxu0 %v1341
          %1660 = vmatmul.mubr.bf16.gmra.mrb[0].mxu0 %v1340
          %v1661 = vpop.f32.mrb[0].mxu0
          %v1662 = vadd.f32 %v1501, %v1661
          %v1663 = vpop.f32.mrb[0].mxu0
          %v1664 = vpop.f32.mrb[0].mxu0
          %v1665 = vadd.f32 %v1504, %v1664
          %v1666 = vpop.f32.mrb[0].mxu0
          %1667 = vmatprep.mubr.bf16.mxu0 %v1345
          %1668 = vmatmul.mubr.bf16.gmra.mrb[0].mxu0 %v1344
          %v1669 = vpop.f32.mrb[0].mxu0
          %v1670 = vadd.f32 %v1509, %v1669
          %v1671 = vpop.f32.mrb[0].mxu0
          %v1672 = vpop.f32.mrb[0].mxu0
          %v1673 = vadd.f32 %v1512, %v1672
          %v1674 = vpop.f32.mrb[0].mxu0
          %1675 = vmatprep.mubr.bf16.mxu0 %v1349
          %1676 = vmatmul.mubr.bf16.gmra.mrb[0].mxu0 %v1348
          %v1677 = vpop.f32.mrb[0].mxu0
          %v1678 = vadd.f32 %v1517, %v1677
          %v1679 = vpop.f32.mrb[0].mxu0
          %v1680 = vpop.f32.mrb[0].mxu0
          %v1681 = vadd.f32 %v1520, %v1680
          %v1682 = vpop.f32.mrb[0].mxu0
          %1683 = vmatprep.mubr.bf16.mxu0 %v1353
          %1684 = vmatmul.mubr.bf16.gmra.mrb[0].mxu0 %v1352
          %v1685 = vpop.f32.mrb[0].mxu0
          %v1686 = vadd.f32 %v1525, %v1685
          %v1687 = vpop.f32.mrb[0].mxu0
          %v1688 = vpop.f32.mrb[0].mxu0
          %v1689 = vadd.f32 %v1528, %v1688
          %v1690 = vpop.f32.mrb[0].mxu0
          %1691 = vmatprep.mubr.bf16.mxu0 %v1357
          %1692 = vmatmul.mubr.bf16.gmra.mrb[0].mxu0 %v1356
          %v1693 = vpop.f32.mrb[0].mxu0
          %v1694 = vadd.f32 %v1533, %v1693
          %v1695 = vpop.f32.mrb[0].mxu0
          %v1696 = vpop.f32.mrb[0].mxu0
          %v1697 = vadd.f32 %v1536, %v1696
          %v1698 = vpop.f32.mrb[0].mxu0
          %1699 = vmatprep.mubr.bf16.mxu0 %v1361
          %1700 = vmatmul.mubr.bf16.gmra.mrb[0].mxu0 %v1360
          %v1701 = vpop.f32.mrb[0].mxu0
          %v1702 = vadd.f32 %v1541, %v1701
          %v1703 = vpop.f32.mrb[0].mxu0
          %v1704 = vpop.f32.mrb[0].mxu0
          %v1705 = vadd.f32 %v1544, %v1704
          %v1706 = vpop.f32.mrb[0].mxu0
          %1707 = vmatprep.mubr.bf16.mxu0 %v1365
          %1708 = vmatmul.mubr.bf16.gmra.mrb[0].mxu0 %v1364
          %v1709 = vpop.f32.mrb[0].mxu0
          %v1710 = vadd.f32 %v1549, %v1709
          %v1711 = vpop.f32.mrb[0].mxu0
          %v1712 = vpop.f32.mrb[0].mxu0
          %v1713 = vadd.f32 %v1552, %v1712
          %v1714 = vpop.f32.mrb[0].mxu0
          %1715 = vmatprep.mubr.bf16.mxu0 %v1369
          %1716 = vmatmul.mubr.bf16.gmra.mrb[0].mxu0 %v1368
          %v1717 = vpop.f32.mrb[0].mxu0
          %v1718 = vadd.f32 %v1557, %v1717
          %v1719 = vpop.f32.mrb[0].mxu0
          %v1720 = vpop.f32.mrb[0].mxu0
          %v1721 = vadd.f32 %v1560, %v1720
          %v1722 = vpop.f32.mrb[0].mxu0
          %1723 = vmatprep.mubr.bf16.mxu0 %v1373
          %1724 = vmatmul.mubr.bf16.gmra.mrb[0].mxu0 %v1372
          %v1725 = vpop.f32.mrb[0].mxu0
          %v1726 = vadd.f32 %v1565, %v1725
          %v1727 = vpop.f32.mrb[0].mxu0
          %v1728 = vpop.f32.mrb[0].mxu0
          %v1729 = vadd.f32 %v1568, %v1728
          %v1730 = vpop.f32.mrb[0].mxu0
          %1731 = vmatprep.mubr.bf16.mxu0 %v1377
          %1732 = vmatmul.mubr.bf16.gmra.mrb[0].mxu0 %v1376
          %v1733 = vpop.f32.mrb[0].mxu0
          %v1734 = vadd.f32 %v1573, %v1733
          %v1735 = vpop.f32.mrb[0].mxu0
          %v1736 = vpop.f32.mrb[0].mxu0
          %v1737 = vadd.f32 %v1576, %v1736
          %v1738 = vpop.f32.mrb[0].mxu0
          %1739 = vmatprep.mubr.bf16.mxu0 %v1381
          %1740 = vmatmul.mubr.bf16.gmra.mrb[0].mxu0 %v1380
          %v1741 = vpop.f32.mrb[0].mxu0
          %v1742 = vadd.f32 %v1581, %v1741
          %v1743 = vpop.f32.mrb[0].mxu0
          %v1744 = vpop.f32.mrb[0].mxu0
          %v1745 = vadd.f32 %v1584, %v1744
          %v1746 = vpop.f32.mrb[0].mxu0
          %1747 = vmatprep.mubr.bf16.mxu0 %v1385
          %1748 = vmatmul.mubr.bf16.gmra.mrb[0].mxu0 %v1384
          %v1749 = vpop.f32.mrb[0].mxu0
          %v1750 = vadd.f32 %v1589, %v1749
          %v1751 = vpop.f32.mrb[0].mxu0
          %v1752 = vpop.f32.mrb[0].mxu0
          %v1753 = vadd.f32 %v1592, %v1752
          %v1754 = vpop.f32.mrb[0].mxu0
          %1755 = vmatprep.mubr.bf16.mxu0 %v1389
          %1756 = vmatmul.mubr.bf16.gmra.mrb[0].mxu0 %v1388
          %v1757 = vpop.f32.mrb[0].mxu0
          %v1758 = vadd.f32 %v1597, %v1757
          %v1759 = vpop.f32.mrb[0].mxu0
          %v1760 = vpop.f32.mrb[0].mxu0
          %v1761 = vadd.f32 %v1600, %v1760
          %v1762 = vpop.f32.mrb[0].mxu0
          %1763 = vmatprep.mubr.bf16.mxu0 %v1393
          %1764 = vmatmul.mubr.bf16.gmra.mrb[0].mxu0 %v1392
          %v1765 = vpop.f32.mrb[0].mxu0
          %v1766 = vadd.f32 %v1605, %v1765
          %v1767 = vpop.f32.mrb[0].mxu0
          %v1768 = vpop.f32.mrb[0].mxu0
          %v1769 = vadd.f32 %v1608, %v1768
          %v1770 = vpop.f32.mrb[0].mxu0
          %1771 = vmatprep.mubr.bf16.mxu0 %v1397
          %1772 = vmatmul.mubr.bf16.gmra.mrb[0].mxu0 %v1396
          %v1773 = vpop.f32.mrb[0].mxu0
          %v1774 = vadd.f32 %v1613, %v1773
          %v1775 = vpop.f32.mrb[0].mxu0
          %v1776 = vpop.f32.mrb[0].mxu0
          %v1777 = vadd.f32 %v1616, %v1776
          %v1778 = vpop.f32.mrb[0].mxu0
          %1779 = vmatprep.mubr.bf16.mxu0 %v1401
          %1780 = vmatmul.mubr.bf16.gmra.mrb[0].mxu0 %v1400
          %v1781 = vpop.f32.mrb[0].mxu0
          %v1782 = vadd.f32 %v1621, %v1781
          %v1783 = vpop.f32.mrb[0].mxu0
          %v1784 = vpop.f32.mrb[0].mxu0
          %v1785 = vadd.f32 %v1624, %v1784
          %v1786 = vpop.f32.mrb[0].mxu0
          %1787 = vdwg.mxu0
          %v1788 = vadd.f32 %v1050, %v1662
          %v1789 = vadd.f32 %v1051, %v1665
          %v1790 = vadd.f32 %v1052, %v1670
          %v1791 = vadd.f32 %v1053, %v1673
          %v1792 = vadd.f32 %v1054, %v1678
          %v1793 = vadd.f32 %v1055, %v1681
          %v1794 = vadd.f32 %v1056, %v1686
          %v1795 = vadd.f32 %v1057, %v1689
          %v1796 = vadd.f32 %v1058, %v1694
          %v1797 = vadd.f32 %v1059, %v1697
          %v1798 = vadd.f32 %v1060, %v1702
          %v1799 = vadd.f32 %v1061, %v1705
          %v1800 = vadd.f32 %v1062, %v1710
          %v1801 = vadd.f32 %v1063, %v1713
          %v1802 = vadd.f32 %v1064, %v1718
          %v1803 = vadd.f32 %v1065, %v1721
          %v1804 = vadd.f32 %v1066, %v1726
          %v1805 = vadd.f32 %v1067, %v1729
          %v1806 = vadd.f32 %v1068, %v1734
          %v1807 = vadd.f32 %v1069, %v1737
          %v1808 = vadd.f32 %v1070, %v1742
          %v1809 = vadd.f32 %v1071, %v1745
          %v1810 = vadd.f32 %v1072, %v1750
          %v1811 = vadd.f32 %v1073, %v1753
          %v1812 = vadd.f32 %v1074, %v1758
          %v1813 = vadd.f32 %v1075, %v1761
          %v1814 = vadd.f32 %v1076, %v1766
          %v1815 = vadd.f32 %v1077, %v1769
          %v1816 = vadd.f32 %v1078, %v1774
          %v1817 = vadd.f32 %v1079, %v1777
          %v1818 = vadd.f32 %v1080, %v1782
          %v1819 = vadd.f32 %v1081, %v1785
          %vm1820 = vcmask 261120
          %1821 = vst.msk [vmem:[#allocation2] sm:$0xff] %vm1820, %v1788
          %1822 = vst.msk [vmem:[#allocation2 + $0x8] sm:$0xff] %vm1820, %v1789
          %1823 = vst.msk [vmem:[#allocation2 + $0x10] sm:$0xff] %vm1820, %v1790
          %1824 = vst.msk [vmem:[#allocation2 + $0x18] sm:$0xff] %vm1820, %v1791
          %1825 = vst.msk [vmem:[#allocation2 + $0x20] sm:$0xff] %vm1820, %v1792
          %1826 = vst.msk [vmem:[#allocation2 + $0x28] sm:$0xff] %vm1820, %v1793
          %1827 = vst.msk [vmem:[#allocation2 + $0x30] sm:$0xff] %vm1820, %v1794
          %1828 = vst.msk [vmem:[#allocation2 + $0x38] sm:$0xff] %vm1820, %v1795
          %1829 = vst.msk [vmem:[#allocation2 + $0x40] sm:$0xff] %vm1820, %v1796
          %1830 = vst.msk [vmem:[#allocation2 + $0x48] sm:$0xff] %vm1820, %v1797
          %1831 = vst.msk [vmem:[#allocation2 + $0x50] sm:$0xff] %vm1820, %v1798
          %1832 = vst.msk [vmem:[#allocation2 + $0x58] sm:$0xff] %vm1820, %v1799
          %1833 = vst.msk [vmem:[#allocation2 + $0x60] sm:$0xff] %vm1820, %v1800
          %1834 = vst.msk [vmem:[#allocation2 + $0x68] sm:$0xff] %vm1820, %v1801
          %1835 = vst.msk [vmem:[#allocation2 + $0x70] sm:$0xff] %vm1820, %v1802
          %1836 = vst.msk [vmem:[#allocation2 + $0x78] sm:$0xff] %vm1820, %v1803
          %1837 = vst.msk [vmem:[#allocation2 + $0x80] sm:$0xff] %vm1820, %v1804
          %1838 = vst.msk [vmem:[#allocation2 + $0x88] sm:$0xff] %vm1820, %v1805
          %1839 = vst.msk [vmem:[#allocation2 + $0x90] sm:$0xff] %vm1820, %v1806
          %1840 = vst.msk [vmem:[#allocation2 + $0x98] sm:$0xff] %vm1820, %v1807
          %1841 = vst.msk [vmem:[#allocation2 + $0xa0] sm:$0xff] %vm1820, %v1808
          %1842 = vst.msk [vmem:[#allocation2 + $0xa8] sm:$0xff] %vm1820, %v1809
          %1843 = vst.msk [vmem:[#allocation2 + $0xb0] sm:$0xff] %vm1820, %v1810
          %1844 = vst.msk [vmem:[#allocation2 + $0xb8] sm:$0xff] %vm1820, %v1811
          %1845 = vst.msk [vmem:[#allocation2 + $0xc0] sm:$0xff] %vm1820, %v1812
          %1846 = vst.msk [vmem:[#allocation2 + $0xc8] sm:$0xff] %vm1820, %v1813
          %1847 = vst.msk [vmem:[#allocation2 + $0xd0] sm:$0xff] %vm1820, %v1814
          %1848 = vst.msk [vmem:[#allocation2 + $0xd8] sm:$0xff] %vm1820, %v1815
          %1849 = vst.msk [vmem:[#allocation2 + $0xe0] sm:$0xff] %vm1820, %v1816
          %1850 = vst.msk [vmem:[#allocation2 + $0xe8] sm:$0xff] %vm1820, %v1817
          %1851 = vst.msk [vmem:[#allocation2 + $0xf0] sm:$0xff] %vm1820, %v1818
          %1852 = vst.msk [vmem:[#allocation2 + $0xf8] sm:$0xff] %vm1820, %v1819
        $region48: #{tpu_custom_call.1} parent=35 // pred_fallthru
          _
        // Predicated region
        $region49: #{tpu_custom_call.1} parent=35 // pred_check
          %p1853 = pneg %p361
        $region50: #{tpu_custom_call.1} parent=35 // pred_check_branch
          %1855 = sbr.rel (%p1853) target = $region52
        $region51: #{tpu_custom_call.1} parent=35 // pred_region
          %v1856 = vld [vmem:[#allocation2] sm:$0xff]
          %v1857 = vld [vmem:[#allocation2 + $0x8] sm:$0xff]
          %v1858 = vld [vmem:[#allocation2 + $0x10] sm:$0xff]
          %v1859 = vld [vmem:[#allocation2 + $0x18] sm:$0xff]
          %v1860 = vld [vmem:[#allocation2 + $0x20] sm:$0xff]
          %v1861 = vld [vmem:[#allocation2 + $0x28] sm:$0xff]
          %v1862 = vld [vmem:[#allocation2 + $0x30] sm:$0xff]
          %v1863 = vld [vmem:[#allocation2 + $0x38] sm:$0xff]
          %v1864 = vld [vmem:[#allocation2 + $0x40] sm:$0xff]
          %v1865 = vld [vmem:[#allocation2 + $0x48] sm:$0xff]
          %v1866 = vld [vmem:[#allocation2 + $0x50] sm:$0xff]
          %v1867 = vld [vmem:[#allocation2 + $0x58] sm:$0xff]
          %v1868 = vld [vmem:[#allocation2 + $0x60] sm:$0xff]
          %v1869 = vld [vmem:[#allocation2 + $0x68] sm:$0xff]
          %v1870 = vld [vmem:[#allocation2 + $0x70] sm:$0xff]
          %v1871 = vld [vmem:[#allocation2 + $0x78] sm:$0xff]
          %v1872 = vld [vmem:[#allocation2 + $0x80] sm:$0xff]
          %v1873 = vld [vmem:[#allocation2 + $0x88] sm:$0xff]
          %v1874 = vld [vmem:[#allocation2 + $0x90] sm:$0xff]
          %v1875 = vld [vmem:[#allocation2 + $0x98] sm:$0xff]
          %v1876 = vld [vmem:[#allocation2 + $0xa0] sm:$0xff]
          %v1877 = vld [vmem:[#allocation2 + $0xa8] sm:$0xff]
          %v1878 = vld [vmem:[#allocation2 + $0xb0] sm:$0xff]
          %v1879 = vld [vmem:[#allocation2 + $0xb8] sm:$0xff]
          %v1880 = vld [vmem:[#allocation2 + $0xc0] sm:$0xff]
          %v1881 = vld [vmem:[#allocation2 + $0xc8] sm:$0xff]
          %v1882 = vld [vmem:[#allocation2 + $0xd0] sm:$0xff]
          %v1883 = vld [vmem:[#allocation2 + $0xd8] sm:$0xff]
          %v1884 = vld [vmem:[#allocation2 + $0xe0] sm:$0xff]
          %v1885 = vld [vmem:[#allocation2 + $0xe8] sm:$0xff]
          %v1886 = vld [vmem:[#allocation2 + $0xf0] sm:$0xff]
          %v1887 = vld [vmem:[#allocation2 + $0xf8] sm:$0xff]
          %v1888 = vld [vmem:[%s5] sm:$0x1]
          %v1890 = vlaneseq
          %v1891 = vshrl.u32 %v1890, 7
          %v1892 = vsub.s32 0, %v1891
          %v1893 = vrot.slane %v1888, %v1892
          %v1895 = vadd.f32 %v1856, %v1893
          %v1896 = vadd.f32 %v1857, %v1893
          %v1897 = vadd.f32 %v1858, %v1893
          %v1898 = vadd.f32 %v1859, %v1893
          %v1899 = vadd.f32 %v1860, %v1893
          %v1900 = vadd.f32 %v1861, %v1893
          %v1901 = vadd.f32 %v1862, %v1893
          %v1902 = vadd.f32 %v1863, %v1893
          %v1903 = vadd.f32 %v1864, %v1893
          %v1904 = vadd.f32 %v1865, %v1893
          %v1905 = vadd.f32 %v1866, %v1893
          %v1906 = vadd.f32 %v1867, %v1893
          %v1907 = vadd.f32 %v1868, %v1893
          %v1908 = vadd.f32 %v1869, %v1893
          %v1909 = vadd.f32 %v1870, %v1893
          %v1910 = vadd.f32 %v1871, %v1893
          %v1911 = vadd.f32 %v1872, %v1893
          %v1912 = vadd.f32 %v1873, %v1893
          %v1913 = vadd.f32 %v1874, %v1893
          %v1914 = vadd.f32 %v1875, %v1893
          %v1915 = vadd.f32 %v1876, %v1893
          %v1916 = vadd.f32 %v1877, %v1893
          %v1917 = vadd.f32 %v1878, %v1893
          %v1918 = vadd.f32 %v1879, %v1893
          %v1919 = vadd.f32 %v1880, %v1893
          %v1920 = vadd.f32 %v1881, %v1893
          %v1921 = vadd.f32 %v1882, %v1893
          %v1922 = vadd.f32 %v1883, %v1893
          %v1923 = vadd.f32 %v1884, %v1893
          %v1924 = vadd.f32 %v1885, %v1893
          %v1925 = vadd.f32 %v1886, %v1893
          %v1926 = vadd.f32 %v1887, %v1893
          %v1927 = vmax.f32 %v1895, 0.0
          %v1928 = vmax.f32 %v1896, 0.0
          %v1929 = vmax.f32 %v1897, 0.0
          %v1930 = vmax.f32 %v1898, 0.0
          %v1931 = vmax.f32 %v1899, 0.0
          %v1932 = vmax.f32 %v1900, 0.0
          %v1933 = vmax.f32 %v1901, 0.0
          %v1934 = vmax.f32 %v1902, 0.0
          %v1935 = vmax.f32 %v1903, 0.0
          %v1936 = vmax.f32 %v1904, 0.0
          %v1937 = vmax.f32 %v1905, 0.0
          %v1938 = vmax.f32 %v1906, 0.0
          %v1939 = vmax.f32 %v1907, 0.0
          %v1940 = vmax.f32 %v1908, 0.0
          %v1941 = vmax.f32 %v1909, 0.0
          %v1942 = vmax.f32 %v1910, 0.0
          %v1943 = vmax.f32 %v1911, 0.0
          %v1944 = vmax.f32 %v1912, 0.0
          %v1945 = vmax.f32 %v1913, 0.0
          %v1946 = vmax.f32 %v1914, 0.0
          %v1947 = vmax.f32 %v1915, 0.0
          %v1948 = vmax.f32 %v1916, 0.0
          %v1949 = vmax.f32 %v1917, 0.0
          %v1950 = vmax.f32 %v1918, 0.0
          %v1951 = vmax.f32 %v1919, 0.0
          %v1952 = vmax.f32 %v1920, 0.0
          %v1953 = vmax.f32 %v1921, 0.0
          %v1954 = vmax.f32 %v1922, 0.0
          %v1955 = vmax.f32 %v1923, 0.0
          %v1956 = vmax.f32 %v1924, 0.0
          %v1957 = vmax.f32 %v1925, 0.0
          %v1958 = vmax.f32 %v1926, 0.0
          %v1959 = vpack.c.bf16 %v1928, %v1927
          %v1960 = vpack.c.bf16 %v1930, %v1929
          %v1961 = vpack.c.bf16 %v1932, %v1931
          %v1962 = vpack.c.bf16 %v1934, %v1933
          %v1963 = vpack.c.bf16 %v1936, %v1935
          %v1964 = vpack.c.bf16 %v1938, %v1937
          %v1965 = vpack.c.bf16 %v1940, %v1939
          %v1966 = vpack.c.bf16 %v1942, %v1941
          %v1967 = vpack.c.bf16 %v1944, %v1943
          %v1968 = vpack.c.bf16 %v1946, %v1945
          %v1969 = vpack.c.bf16 %v1948, %v1947
          %v1970 = vpack.c.bf16 %v1950, %v1949
          %v1971 = vpack.c.bf16 %v1952, %v1951
          %v1972 = vpack.c.bf16 %v1954, %v1953
          %v1973 = vpack.c.bf16 %v1956, %v1955
          %v1974 = vpack.c.bf16 %v1958, %v1957
          %v1991 = vunpack.c.l.b16 %v1959
          %v1992 = vunpack.c.h.b16 %v1959
          %v1993 = vunpack.c.l.b16 %v1960
          %v1994 = vunpack.c.h.b16 %v1960
          %v1995 = vunpack.c.l.b16 %v1961
          %v1996 = vunpack.c.h.b16 %v1961
          %v1997 = vunpack.c.l.b16 %v1962
          %v1998 = vunpack.c.h.b16 %v1962
          %v1999 = vunpack.c.l.b16 %v1963
          %v2000 = vunpack.c.h.b16 %v1963
          %v2001 = vunpack.c.l.b16 %v1964
          %v2002 = vunpack.c.h.b16 %v1964
          %v2003 = vunpack.c.l.b16 %v1965
          %v2004 = vunpack.c.h.b16 %v1965
          %v2005 = vunpack.c.l.b16 %v1966
          %v2006 = vunpack.c.h.b16 %v1966
          %v2007 = vunpack.c.l.b16 %v1967
          %v2008 = vunpack.c.h.b16 %v1967
          %v2009 = vunpack.c.l.b16 %v1968
          %v2010 = vunpack.c.h.b16 %v1968
          %v2011 = vunpack.c.l.b16 %v1969
          %v2012 = vunpack.c.h.b16 %v1969
          %v2013 = vunpack.c.l.b16 %v1970
          %v2014 = vunpack.c.h.b16 %v1970
          %v2015 = vunpack.c.l.b16 %v1971
          %v2016 = vunpack.c.h.b16 %v1971
          %v2017 = vunpack.c.l.b16 %v1972
          %v2018 = vunpack.c.h.b16 %v1972
          %v2019 = vunpack.c.l.b16 %v1973
          %v2020 = vunpack.c.h.b16 %v1973
          %v2021 = vunpack.c.l.b16 %v1974
          %v2022 = vunpack.c.h.b16 %v1974
          %v2023 = vpack.c.b16 %v1991, %v1991
          %v2024 = vpack.c.b16 %v1992, %v1992
          %v2025 = vpack.c.b16 %v1993, %v1993
          %v2026 = vpack.c.b16 %v1994, %v1994
          %v2027 = vpack.c.b16 %v1995, %v1995
          %v2028 = vpack.c.b16 %v1996, %v1996
          %v2029 = vpack.c.b16 %v1997, %v1997
          %v2030 = vpack.c.b16 %v1998, %v1998
          %v2031 = vpack.c.b16 %v1999, %v1999
          %v2032 = vpack.c.b16 %v2000, %v2000
          %v2033 = vpack.c.b16 %v2001, %v2001
          %v2034 = vpack.c.b16 %v2002, %v2002
          %v2035 = vpack.c.b16 %v2003, %v2003
          %v2036 = vpack.c.b16 %v2004, %v2004
          %v2037 = vpack.c.b16 %v2005, %v2005
          %v2038 = vpack.c.b16 %v2006, %v2006
          %v2039 = vpack.c.b16 %v2007, %v2007
          %v2040 = vpack.c.b16 %v2008, %v2008
          %v2041 = vpack.c.b16 %v2009, %v2009
          %v2042 = vpack.c.b16 %v2010, %v2010
          %v2043 = vpack.c.b16 %v2011, %v2011
          %v2044 = vpack.c.b16 %v2012, %v2012
          %v2045 = vpack.c.b16 %v2013, %v2013
          %v2046 = vpack.c.b16 %v2014, %v2014
          %v2047 = vpack.c.b16 %v2015, %v2015
          %v2048 = vpack.c.b16 %v2016, %v2016
          %v2049 = vpack.c.b16 %v2017, %v2017
          %v2050 = vpack.c.b16 %v2018, %v2018
          %v2051 = vpack.c.b16 %v2019, %v2019
          %v2052 = vpack.c.b16 %v2020, %v2020
          %v2053 = vpack.c.b16 %v2021, %v2021
          %v2054 = vpack.c.b16 %v2022, %v2022
          %vm2087 = vcmask 257024
          %2088 = vst.msk [vmem:[%s358] sm:$0xf] %vm2087, %v2023
          %2089 = vst.msk [vmem:[%s358 + $0x4] sm:$0xf] %vm2087, %v2024
          %2090 = vst.msk [vmem:[%s358 + $0x8] sm:$0xf] %vm2087, %v2025
          %2091 = vst.msk [vmem:[%s358 + $0xc] sm:$0xf] %vm2087, %v2026
          %2092 = vst.msk [vmem:[%s358 + $0x10] sm:$0xf] %vm2087, %v2027
          %2093 = vst.msk [vmem:[%s358 + $0x14] sm:$0xf] %vm2087, %v2028
          %2094 = vst.msk [vmem:[%s358 + $0x18] sm:$0xf] %vm2087, %v2029
          %2095 = vst.msk [vmem:[%s358 + $0x1c] sm:$0xf] %vm2087, %v2030
          %2096 = vst.msk [vmem:[%s358 + $0x20] sm:$0xf] %vm2087, %v2031
          %2097 = vst.msk [vmem:[%s358 + $0x24] sm:$0xf] %vm2087, %v2032
          %2098 = vst.msk [vmem:[%s358 + $0x28] sm:$0xf] %vm2087, %v2033
          %2099 = vst.msk [vmem:[%s358 + $0x2c] sm:$0xf] %vm2087, %v2034
          %2100 = vst.msk [vmem:[%s358 + $0x30] sm:$0xf] %vm2087, %v2035
          %2101 = vst.msk [vmem:[%s358 + $0x34] sm:$0xf] %vm2087, %v2036
          %2102 = vst.msk [vmem:[%s358 + $0x38] sm:$0xf] %vm2087, %v2037
          %2103 = vst.msk [vmem:[%s358 + $0x3c] sm:$0xf] %vm2087, %v2038
          %2104 = vst.msk [vmem:[%s358 + $0x40] sm:$0xf] %vm2087, %v2039
          %2105 = vst.msk [vmem:[%s358 + $0x44] sm:$0xf] %vm2087, %v2040
          %2106 = vst.msk [vmem:[%s358 + $0x48] sm:$0xf] %vm2087, %v2041
          %2107 = vst.msk [vmem:[%s358 + $0x4c] sm:$0xf] %vm2087, %v2042
          %2108 = vst.msk [vmem:[%s358 + $0x50] sm:$0xf] %vm2087, %v2043
          %2109 = vst.msk [vmem:[%s358 + $0x54] sm:$0xf] %vm2087, %v2044
          %2110 = vst.msk [vmem:[%s358 + $0x58] sm:$0xf] %vm2087, %v2045
          %2111 = vst.msk [vmem:[%s358 + $0x5c] sm:$0xf] %vm2087, %v2046
          %2112 = vst.msk [vmem:[%s358 + $0x60] sm:$0xf] %vm2087, %v2047
          %2113 = vst.msk [vmem:[%s358 + $0x64] sm:$0xf] %vm2087, %v2048
          %2114 = vst.msk [vmem:[%s358 + $0x68] sm:$0xf] %vm2087, %v2049
          %2115 = vst.msk [vmem:[%s358 + $0x6c] sm:$0xf] %vm2087, %v2050
          %2116 = vst.msk [vmem:[%s358 + $0x70] sm:$0xf] %vm2087, %v2051
          %2117 = vst.msk [vmem:[%s358 + $0x74] sm:$0xf] %vm2087, %v2052
          %2118 = vst.msk [vmem:[%s358 + $0x78] sm:$0xf] %vm2087, %v2053
          %2119 = vst.msk [vmem:[%s358 + $0x7c] sm:$0xf] %vm2087, %v2054
        $region52: #{tpu_custom_call.1} parent=35 // pred_fallthru
          _
        %s2120 = smul.u32 32, %s34
        %p2121 = scmp.lt.s32.totalorder %s2120, 63
        %s2122 = scalar_select %p2121, %s2120, 63
        %s2123 = smul.addr %s2122, 4
        %s2124 = scalar_lea.vmem %s6, %s2123
        // Predicated region
        $region53: #{tpu_custom_call.1} parent=35 // pred_check
          %p2125 = pneg %p188
        $region54: #{tpu_custom_call.1} parent=35 // pred_check_branch
          %2127 = sbr.rel (%p2125) target = $region56
        $region55: #{tpu_custom_call.1} parent=35 // pred_region
          %s2128 = smul.u32 32, %s34
        $region56: #{tpu_custom_call.1} parent=35 // pred_fallthru
          _
      $region36: #{tpu_custom_call.1} parent=5 // pred_fallthru
        _
      %p2129 = scmp.le.s32.totalorder 2, %s25
      // Predicated region
      $region57: #{tpu_custom_call.1} parent=5 // pred_check
        %p2130 = pneg %p2129
      $region58: #{tpu_custom_call.1} parent=5 // pred_check_branch
        %2132 = sbr.rel (%p2130) target = $region60
      $region59: #{tpu_custom_call.1} parent=5 // pred_region
        %s2133 = ssub.s32 %s25, 2
        // Predicated region
        $region61: #{tpu_custom_call.1} parent=59 // pred_check
          %p2134 = pneg %p194
        $region62: #{tpu_custom_call.1} parent=59 // pred_check_branch
          %2136 = sbr.rel (%p2134) target = $region64
        $region63: #{tpu_custom_call.1} parent=59 // pred_region
          %s2137 = smul.u32 32, %s36
          %p2138 = scmp.lt.s32.totalorder %s2137, 63
          %s2139 = scalar_select %p2138, %s2137, 63
          %s2140 = smul.addr %s2139, 4
          %s2141 = scalar_lea.vmem %s6, %s2140
        $region64: #{tpu_custom_call.1} parent=59 // pred_fallthru
          _
      $region60: #{tpu_custom_call.1} parent=5 // pred_fallthru
        _
    $region6: #{tpu_custom_call.1} parent=1 // loop_footer
      %s29 = sadd.s32 1, %s25
    $region7: #{tpu_custom_call.1} parent=1 // loop_footer_branch
      %24 = sbr.rel target = $region3
    $region8: #{tpu_custom_call.1} parent=1 // loop_exit
      _
    %2142 = vsyncpa [#allocation7], 1
    %s2143 = scalar_lea.sflag [#allocation7], 1
    %2144 = vsyncpa %s2143, 1

</llo_original>
